<compile_context>
chip_gen: v7x
topology: tpu7x:2x2x1
jax: 0.10.0
libtpu: 0.0.40
codegen_flags: <defaults>
</compile_context>

<pallas_src>
import functools

import jax
import jax.numpy as jnp
from jax.experimental import pallas as pl
from jax.experimental.pallas import tpu as pltpu


IN_FEATURES = 28 * 28      # 784
H1, H2 = 256, 128
OUT_FEATURES = 10
OUT_PAD = 128              # lane-dense padded logits width


def _round_up(n, m):
    return ((n + m - 1) // m) * m


def mlp_kernel(x_ref, w1_ref, b1_ref, w2_ref, b2_ref, w3_ref, b3_ref, o_ref):
    # Three MXU matmuls + VPU bias-add / ReLU, fully fused. Weights stay resident
    # in VMEM across the whole grid; only the x tile and the output slab stream.
    x = x_ref[...]

    h1 = jnp.dot(x, w1_ref[...], preferred_element_type=jnp.float32)
    h1 = jnp.maximum(h1 + b1_ref[...], 0.0)

    h2 = jnp.dot(h1, w2_ref[...], preferred_element_type=jnp.float32)
    h2 = jnp.maximum(h2 + b2_ref[...], 0.0)

    out = jnp.dot(h2, w3_ref[...], preferred_element_type=jnp.float32)
    out = out + b3_ref[...]

    o_ref[...] = out.astype(o_ref.dtype)


@functools.partial(jax.jit, static_argnames=("batch_tile",))
def mlp_forward(x, params, batch_tile=256):
    """x: (B, 1, 28, 28) or (B, 784). Returns logits (B, 10), float32."""
    w1, b1, w2, b2, w3, b3 = params
    x2d = x.reshape(-1, IN_FEATURES).astype(jnp.float32)   # == torch x.view(-1, 784)
    B = x2d.shape[0]

    # Batch tile: multiple of 8 (sublane), capped at batch_tile; pad the batch so
    # the grid covers it exactly (remainder rows are zero and sliced off below).
    tb = min(batch_tile, _round_up(B, 8))
    Bp = _round_up(B, tb)
    if Bp != B:
        x2d = jnp.pad(x2d, ((0, Bp - B), (0, 0)))

    # Lane-dense output: zero-pad fc3 to 128 output columns, slice afterwards.
    w3p = jnp.pad(w3, ((0, 0), (0, OUT_PAD - OUT_FEATURES)))
    b3p = jnp.pad(b3, (0, OUT_PAD - OUT_FEATURES)).reshape(1, OUT_PAD)
    b1r = b1.reshape(1, H1)
    b2r = b2.reshape(1, H2)

    # Full-array, VMEM-resident specs for the (small) weight set: loaded once,
    # not re-DMA'd / double-buffered per grid step.
    vmem_full = pl.BlockSpec(memory_space=pltpu.MemorySpace.VMEM)

    out_padded = pl.pallas_call(
        mlp_kernel,
        out_shape=jax.ShapeDtypeStruct((Bp, OUT_PAD), jnp.float32),
        grid_spec=pltpu.PrefetchScalarGridSpec(
            num_scalar_prefetch=0,
            grid=(Bp // tb,),
            in_specs=[
                pl.BlockSpec((tb, IN_FEATURES), lambda i: (i, 0)),  # x tile (streamed)
                vmem_full,   # w1 (784, 256)   resident
                vmem_full,   # b1 (1, 256)
                vmem_full,   # w2 (256, 128)
                vmem_full,   # b2 (1, 128)
                vmem_full,   # w3 (128, 128)   padded
                vmem_full,   # b3 (1, 128)     padded
            ],
            out_specs=pl.BlockSpec((tb, OUT_PAD), lambda i: (i, 0)),
        ),
        compiler_params=pltpu.CompilerParams(
            dimension_semantics=("parallel",),
            vmem_limit_bytes=64 * 1024 * 1024,
        ),
    )(x2d, w1, b1r, w2, b2r, w3p, b3p)

    return out_padded[:B, :OUT_FEATURES]


def init_params(key):
    """Deterministic init mimicking torch.nn.Linear defaults (U[-1/sqrt(fan_in), ...])."""
    dims = [(IN_FEATURES, H1), (H1, H2), (H2, OUT_FEATURES)]
    params = []
    for fan_in, fan_out in dims:
        kw, kb, key = jax.random.split(key, 3)
        bound = 1.0 / jnp.sqrt(fan_in)
        w = jax.random.uniform(kw, (fan_in, fan_out), jnp.float32, -bound, bound)
        b = jax.random.uniform(kb, (fan_out,), jnp.float32, -bound, bound)
        params.extend([w, b])
    return tuple(params)


def mlp_reference(x, params):
    w1, b1, w2, b2, w3, b3 = params
    x2d = x.reshape(-1, IN_FEATURES)
    h1 = jnp.maximum(x2d @ w1 + b1, 0.0)
    h2 = jnp.maximum(h1 @ w2 + b2, 0.0)
    return h2 @ w3 + b3


if __name__ == "__main__":
    key = jax.random.PRNGKey(0)
    kx, kp = jax.random.split(key)

    # B=300 exercises both the multi-step grid (tb=256 -> 2 steps after padding)
    # and the non-divisible-batch padding path.
    B = 300
    x = jax.random.normal(kx, (B, 1, 28, 28), jnp.float32)  # MNIST-like NCHW input
    params = init_params(kp)

    out = mlp_forward(x, params)
    jax.block_until_ready(out)

    ref = mlp_reference(x, params)
    assert out.shape == (B, OUT_FEATURES), out.shape
    assert jnp.allclose(out, ref, atol=1e-4, rtol=1e-4), "mismatch vs pure-JAX reference"

    print("KERNEL_OK")
</pallas_src>

<mosaic_0001>
module attributes {stable_mosaic.version = 11 : i64} {
  func.func @mlp_kernel(%arg0: i32, %arg1: memref<256x784xf32, #tpu.memory_space<vmem>>, %arg2: memref<784x256xf32, #tpu.memory_space<vmem>>, %arg3: memref<1x256xf32, #tpu.memory_space<vmem>>, %arg4: memref<256x128xf32, #tpu.memory_space<vmem>>, %arg5: memref<1x128xf32, #tpu.memory_space<vmem>>, %arg6: memref<128x128xf32, #tpu.memory_space<vmem>>, %arg7: memref<1x128xf32, #tpu.memory_space<vmem>>, %arg8: memref<256x128xf32, #tpu.memory_space<vmem>>) attributes {dimension_semantics = [#tpu.dimension_semantics<parallel>], iteration_bounds = array<i64: 2>, scalar_prefetch = 0 : i64, scratch_operands = 0 : i64, tpu.core_type = #tpu.core_type<tc>, window_params = [{transform_indices = @transform_0, window_bounds = array<i64: 256, 784>}, {pipeline_mode = #tpu.pipeline_mode<synchronous>, transform_indices = @transform_1, window_bounds = array<i64: 784, 256>}, {pipeline_mode = #tpu.pipeline_mode<synchronous>, transform_indices = @transform_2, window_bounds = array<i64: 1, 256>}, {pipeline_mode = #tpu.pipeline_mode<synchronous>, transform_indices = @transform_3, window_bounds = array<i64: 256, 128>}, {pipeline_mode = #tpu.pipeline_mode<synchronous>, transform_indices = @transform_4, window_bounds = array<i64: 1, 128>}, {pipeline_mode = #tpu.pipeline_mode<synchronous>, transform_indices = @transform_5, window_bounds = array<i64: 128, 128>}, {pipeline_mode = #tpu.pipeline_mode<synchronous>, transform_indices = @transform_6, window_bounds = array<i64: 1, 128>}, {transform_indices = @transform_7, window_bounds = array<i64: 256, 128>}]} {
    %c0 = arith.constant 0 : index
    %c0_0 = arith.constant 0 : index
    %0 = vector.load %arg1[%c0, %c0_0] : memref<256x784xf32, #tpu.memory_space<vmem>>, vector<256x784xf32>
    %c0_1 = arith.constant 0 : index
    %c0_2 = arith.constant 0 : index
    %1 = vector.load %arg2[%c0_1, %c0_2] : memref<784x256xf32, #tpu.memory_space<vmem>>, vector<784x256xf32>
    %cst = arith.constant dense<0.000000e+00> : vector<256x256xf32>
    %2 = tpu.matmul %0, %1, %cst {dimension_numbers = #tpu.dot_dimension_numbers<[1], [0], [0], [1], [0, 0, 1, 1], [], []>} : vector<256x784xf32>, vector<784x256xf32>, vector<256x256xf32> -> vector<256x256xf32>
    %c0_3 = arith.constant 0 : index
    %c0_4 = arith.constant 0 : index
    %3 = vector.load %arg3[%c0_3, %c0_4] : memref<1x256xf32, #tpu.memory_space<vmem>>, vector<1x256xf32>
    %4 = vector.broadcast %3 : vector<1x256xf32> to vector<256x256xf32>
    %5 = arith.addf %2, %4 : vector<256x256xf32>
    %cst_5 = arith.constant 0.000000e+00 : f32
    %6 = vector.broadcast %cst_5 : f32 to vector<256x256xf32>
    %7 = arith.maximumf %5, %6 : vector<256x256xf32>
    %c0_6 = arith.constant 0 : index
    %c0_7 = arith.constant 0 : index
    %8 = vector.load %arg4[%c0_6, %c0_7] : memref<256x128xf32, #tpu.memory_space<vmem>>, vector<256x128xf32>
    %cst_8 = arith.constant dense<0.000000e+00> : vector<256x128xf32>
    %9 = tpu.matmul %7, %8, %cst_8 {dimension_numbers = #tpu.dot_dimension_numbers<[1], [0], [0], [1], [0, 0, 1, 1], [], []>} : vector<256x256xf32>, vector<256x128xf32>, vector<256x128xf32> -> vector<256x128xf32>
    %c0_9 = arith.constant 0 : index
    %c0_10 = arith.constant 0 : index
    %10 = vector.load %arg5[%c0_9, %c0_10] : memref<1x128xf32, #tpu.memory_space<vmem>>, vector<1x128xf32>
    %11 = vector.broadcast %10 : vector<1x128xf32> to vector<256x128xf32>
    %12 = arith.addf %9, %11 : vector<256x128xf32>
    %cst_11 = arith.constant 0.000000e+00 : f32
    %13 = vector.broadcast %cst_11 : f32 to vector<256x128xf32>
    %14 = arith.maximumf %12, %13 : vector<256x128xf32>
    %c0_12 = arith.constant 0 : index
    %c0_13 = arith.constant 0 : index
    %15 = vector.load %arg6[%c0_12, %c0_13] : memref<128x128xf32, #tpu.memory_space<vmem>>, vector<128x128xf32>
    %cst_14 = arith.constant dense<0.000000e+00> : vector<256x128xf32>
    %16 = tpu.matmul %14, %15, %cst_14 {dimension_numbers = #tpu.dot_dimension_numbers<[1], [0], [0], [1], [0, 0, 1, 1], [], []>} : vector<256x128xf32>, vector<128x128xf32>, vector<256x128xf32> -> vector<256x128xf32>
    %c0_15 = arith.constant 0 : index
    %c0_16 = arith.constant 0 : index
    %17 = vector.load %arg7[%c0_15, %c0_16] : memref<1x128xf32, #tpu.memory_space<vmem>>, vector<1x128xf32>
    %18 = vector.broadcast %17 : vector<1x128xf32> to vector<256x128xf32>
    %19 = arith.addf %16, %18 : vector<256x128xf32>
    %c0_17 = arith.constant 0 : index
    %c0_18 = arith.constant 0 : index
    %20 = vector.load %arg8[%c0_17, %c0_18] : memref<256x128xf32, #tpu.memory_space<vmem>>, vector<256x128xf32>
    tpu.vector_store %arg8[%c0_17, %c0_18], %19 {strides = array<i32>} : memref<256x128xf32, #tpu.memory_space<vmem>>, vector<256x128xf32>,
    return
  }
  func.func @transform_0(%arg0: i32) -> (i32, i32) {
    %c0_i32 = arith.constant 0 : i32
    %c0_i32_0 = arith.constant 0 : i32
    return %arg0, %c0_i32 : i32, i32
  }
  func.func @transform_1(%arg0: i32) -> (i32, i32) {
    %c0_i32 = arith.constant 0 : i32
    %c0_i32_0 = arith.constant 0 : i32
    %c0_i32_1 = arith.constant 0 : i32
    return %c0_i32, %c0_i32_0 : i32, i32
  }
  func.func @transform_2(%arg0: i32) -> (i32, i32) {
    %c0_i32 = arith.constant 0 : i32
    %c0_i32_0 = arith.constant 0 : i32
    %c0_i32_1 = arith.constant 0 : i32
    return %c0_i32, %c0_i32_0 : i32, i32
  }
  func.func @transform_3(%arg0: i32) -> (i32, i32) {
    %c0_i32 = arith.constant 0 : i32
    %c0_i32_0 = arith.constant 0 : i32
    %c0_i32_1 = arith.constant 0 : i32
    return %c0_i32, %c0_i32_0 : i32, i32
  }
  func.func @transform_4(%arg0: i32) -> (i32, i32) {
    %c0_i32 = arith.constant 0 : i32
    %c0_i32_0 = arith.constant 0 : i32
    %c0_i32_1 = arith.constant 0 : i32
    return %c0_i32, %c0_i32_0 : i32, i32
  }
  func.func @transform_5(%arg0: i32) -> (i32, i32) {
    %c0_i32 = arith.constant 0 : i32
    %c0_i32_0 = arith.constant 0 : i32
    %c0_i32_1 = arith.constant 0 : i32
    return %c0_i32, %c0_i32_0 : i32, i32
  }
  func.func @transform_6(%arg0: i32) -> (i32, i32) {
    %c0_i32 = arith.constant 0 : i32
    %c0_i32_0 = arith.constant 0 : i32
    %c0_i32_1 = arith.constant 0 : i32
    return %c0_i32, %c0_i32_0 : i32, i32
  }
  func.func @transform_7(%arg0: i32) -> (i32, i32) {
    %c0_i32 = arith.constant 0 : i32
    %c0_i32_0 = arith.constant 0 : i32
    return %arg0, %c0_i32 : i32, i32
  }
}

</mosaic_0001>

<llo_original>
// kernel: mlp_forward.1
$region0: #{mlp_forward.1}
  #allocation0 [shape = 'u32[]', space=smem, size = 0x4, offset = 0x4, fixed_abs, tag = 'smem constant byte address 0x4 - core index']
  #allocation1 [shape = 'u32[144,128]{1,0:T(1,128)}', space=vmem, size = 0x12000, scoped, tag = 'internal scratch']
  %s0 = inlined_call_operand.hbm [shape: f32[512,784], index: 0, kind: input, shape index: {}]
  %s1 = inlined_call_operand.hbm [shape: f32[784,256], index: 1, kind: input, shape index: {}]
  %s2 = inlined_call_operand.hbm [shape: f32[1,256], index: 2, kind: input, shape index: {}]
  %s3 = inlined_call_operand.hbm [shape: f32[256,128], index: 3, kind: input, shape index: {}]
  %s4 = inlined_call_operand.hbm [shape: f32[1,128], index: 4, kind: input, shape index: {}]
  %s5 = inlined_call_operand.hbm [shape: f32[128,128], index: 5, kind: input, shape index: {}]
  %s6 = inlined_call_operand.hbm [shape: f32[1,128], index: 6, kind: input, shape index: {}]
  %s7 = inlined_call_operand.hbm [shape: f32[512,128], index: 7, kind: output, shape index: {}]
  %s8 = sld [smem:[#allocation0]]
  $region89: #{mlp_forward.1} parent=0
    _
  %s10 = ssub.s32 1, %s8
  %s11 = scalar_select 0, %s10, %s8
  $region1: #{mlp_forward.1} parent=0
    #allocation2 [shape = 'u8[1835008]{0}', space=vmem, size = 0x1c0000, scoped, tag = 'input window, operand 0']
    #allocation3 [shape = 's32[2]{0}', space=sflag, size = 0x8, scoped, tag = 'scoped memory for mlp_forward.1']
    #allocation4 [shape = 's32[2]{0}', space=sflag, size = 0x8, scoped, tag = 'scoped memory for mlp_forward.1']
    #allocation5 [shape = 'u8[802816]{0}', space=vmem, size = 0xc4000, scoped, tag = 'input window, operand 1, single buffered']
    #allocation6 [shape = 's32[1]{0}', space=sflag, size = 0x4, scoped, tag = 'scoped memory for mlp_forward.1']
    #allocation7 [shape = 'u8[1024]{0}', space=vmem, size = 0x400, scoped, tag = 'input window, operand 2, single buffered']
    #allocation8 [shape = 'u8[131072]{0}', space=vmem, size = 0x20000, scoped, tag = 'input window, operand 3, single buffered']
    #allocation9 [shape = 's32[1]{0}', space=sflag, size = 0x4, scoped, tag = 'scoped memory for mlp_forward.1']
    #allocation10 [shape = 'u8[512]{0}', space=vmem, size = 0x400, scoped, tag = 'input window, operand 4, single buffered']
    #allocation11 [shape = 'u8[65536]{0}', space=vmem, size = 0x10000, scoped, tag = 'input window, operand 5, single buffered']
    #allocation12 [shape = 's32[1]{0}', space=sflag, size = 0x4, scoped, tag = 'scoped memory for mlp_forward.1']
    #allocation13 [shape = 'u8[512]{0}', space=vmem, size = 0x400, scoped, tag = 'input window, operand 6, single buffered']
    #allocation14 [shape = 'u8[262144]{0}', space=vmem, size = 0x40000, scoped, tag = 'output window, operand 0']
    %12 = vsyncpa [#allocation3], 0
    %s13 = scalar_lea.sflag [#allocation3], 1
    %14 = vsyncpa %s13, 0
    %15 = vsyncpa [#allocation6], 0
    %16 = vsyncpa [#allocation9], 0
    %17 = vsyncpa [#allocation12], 0
    %18 = vsyncpa [#allocation4], 0
    %s19 = scalar_lea.sflag [#allocation4], 1
    %20 = vsyncpa %s19, 0
    loop: start=0, step=1, limit=4
    $region2: #{mlp_forward.1} parent=1 // loop_pre_header
      _
    $region3: #{mlp_forward.1} parent=1 // loop_header
      %s22 = sphi 0, %s26
      %p23 = scmp.ge.s32.totalorder %s22, 4
      %s32 = sphi 0, %s34
      %s35 = sphi 0, %s32
      %s36 = sphi 0, %s35
      %s52 = sphi 0, %s36
      %s56 = sphi 0, %s56
      %s58 = sphi 0, %s56
      %s59 = sphi 0, %s58
      %s73 = sphi 0, %s59
      %s77 = sphi 0, %s77
      %s79 = sphi 0, %s77
      %s80 = sphi 0, %s79
      %s94 = sphi 0, %s80
      %s98 = sphi 0, %s98
      %s100 = sphi 0, %s98
      %s101 = sphi 0, %s100
      %s115 = sphi 0, %s101
      %s119 = sphi 0, %s119
      %s121 = sphi 0, %s119
      %s122 = sphi 0, %s121
      %s136 = sphi 0, %s122
      %s140 = sphi 0, %s140
      %s142 = sphi 0, %s140
      %s143 = sphi 0, %s142
      %s157 = sphi 0, %s143
      %s161 = sphi 0, %s161
      %s163 = sphi 0, %s161
      %s164 = sphi 0, %s163
      %s178 = sphi 0, %s164
      %s184 = sphi 0, %s186
      %s187 = sphi 0, %s184
      %s188 = sphi 0, %s187
      %s204 = sphi 0, %s188
    $region4: #{mlp_forward.1} parent=1 // loop_header_branch
      %25 = sbr.rel (%p23) target = $region8
    $region5: #{mlp_forward.1} parent=1 // loop_body
      %s27 = ssub.s32 %s22, 1
      %s28 = ssub.s32 %s22, 2
      %s29 = sadd.s32 %s22, 1
      %s30 = ssub.s32 %s22, %s29
      %p31 = scmp.eq.s32.totalorder %s30, 0
      %s33 = sadd.s32 %s32, 1
      %s34 = scalar_select %p31, %s32, %s33
      %p37 = pneg %p31
      %p38 = scmp.eq.s32.totalorder %s22, 1
      %p39 = por %p37, %p38
      %p40 = scmp.ne.s32.totalorder %s32, %s35
      %p41 = scmp.eq.s32.totalorder %s22, 0
      %p42 = por %p40, %p41
      %p43 = scmp.ne.s32.totalorder %s32, %s35
      %p44 = scmp.eq.s32.totalorder %s27, 1
      %p45 = por %p43, %p44
      %p46 = scmp.ne.s32.totalorder %s35, %s36
      %p47 = scmp.eq.s32.totalorder %s27, 0
      %p48 = por %p46, %p47
      %p49 = scmp.ne.s32.totalorder %s35, %s36
      %p50 = scmp.eq.s32.totalorder %s28, 1
      %p51 = por %p49, %p50
      %p53 = scmp.ne.s32.totalorder %s36, %s52
      %p54 = scmp.eq.s32.totalorder %s28, 0
      %p55 = por %p53, %p54
      %s57 = sadd.s32 %s56, 1
      %p60 = scmp.eq.s32.totalorder %s22, 1
      %p61 = scmp.ne.s32.totalorder %s56, %s58
      %p62 = scmp.eq.s32.totalorder %s22, 0
      %p63 = por %p61, %p62
      %p64 = scmp.ne.s32.totalorder %s56, %s58
      %p65 = scmp.eq.s32.totalorder %s27, 1
      %p66 = por %p64, %p65
      %p67 = scmp.ne.s32.totalorder %s58, %s59
      %p68 = scmp.eq.s32.totalorder %s27, 0
      %p69 = por %p67, %p68
      %p70 = scmp.ne.s32.totalorder %s58, %s59
      %p71 = scmp.eq.s32.totalorder %s28, 1
      %p72 = por %p70, %p71
      %p74 = scmp.ne.s32.totalorder %s59, %s73
      %p75 = scmp.eq.s32.totalorder %s28, 0
      %p76 = por %p74, %p75
      %s78 = sadd.s32 %s77, 1
      %p81 = scmp.eq.s32.totalorder %s22, 1
      %p82 = scmp.ne.s32.totalorder %s77, %s79
      %p83 = scmp.eq.s32.totalorder %s22, 0
      %p84 = por %p82, %p83
      %p85 = scmp.ne.s32.totalorder %s77, %s79
      %p86 = scmp.eq.s32.totalorder %s27, 1
      %p87 = por %p85, %p86
      %p88 = scmp.ne.s32.totalorder %s79, %s80
      %p89 = scmp.eq.s32.totalorder %s27, 0
      %p90 = por %p88, %p89
      %p91 = scmp.ne.s32.totalorder %s79, %s80
      %p92 = scmp.eq.s32.totalorder %s28, 1
      %p93 = por %p91, %p92
      %p95 = scmp.ne.s32.totalorder %s80, %s94
      %p96 = scmp.eq.s32.totalorder %s28, 0
      %p97 = por %p95, %p96
      %s99 = sadd.s32 %s98, 1
      %p102 = scmp.eq.s32.totalorder %s22, 1
      %p103 = scmp.ne.s32.totalorder %s98, %s100
      %p104 = scmp.eq.s32.totalorder %s22, 0
      %p105 = por %p103, %p104
      %p106 = scmp.ne.s32.totalorder %s98, %s100
      %p107 = scmp.eq.s32.totalorder %s27, 1
      %p108 = por %p106, %p107
      %p109 = scmp.ne.s32.totalorder %s100, %s101
      %p110 = scmp.eq.s32.totalorder %s27, 0
      %p111 = por %p109, %p110
      %p112 = scmp.ne.s32.totalorder %s100, %s101
      %p113 = scmp.eq.s32.totalorder %s28, 1
      %p114 = por %p112, %p113
      %p116 = scmp.ne.s32.totalorder %s101, %s115
      %p117 = scmp.eq.s32.totalorder %s28, 0
      %p118 = por %p116, %p117
      %s120 = sadd.s32 %s119, 1
      %p123 = scmp.eq.s32.totalorder %s22, 1
      %p124 = scmp.ne.s32.totalorder %s119, %s121
      %p125 = scmp.eq.s32.totalorder %s22, 0
      %p126 = por %p124, %p125
      %p127 = scmp.ne.s32.totalorder %s119, %s121
      %p128 = scmp.eq.s32.totalorder %s27, 1
      %p129 = por %p127, %p128
      %p130 = scmp.ne.s32.totalorder %s121, %s122
      %p131 = scmp.eq.s32.totalorder %s27, 0
      %p132 = por %p130, %p131
      %p133 = scmp.ne.s32.totalorder %s121, %s122
      %p134 = scmp.eq.s32.totalorder %s28, 1
      %p135 = por %p133, %p134
      %p137 = scmp.ne.s32.totalorder %s122, %s136
      %p138 = scmp.eq.s32.totalorder %s28, 0
      %p139 = por %p137, %p138
      %s141 = sadd.s32 %s140, 1
      %p144 = scmp.eq.s32.totalorder %s22, 1
      %p145 = scmp.ne.s32.totalorder %s140, %s142
      %p146 = scmp.eq.s32.totalorder %s22, 0
      %p147 = por %p145, %p146
      %p148 = scmp.ne.s32.totalorder %s140, %s142
      %p149 = scmp.eq.s32.totalorder %s27, 1
      %p150 = por %p148, %p149
      %p151 = scmp.ne.s32.totalorder %s142, %s143
      %p152 = scmp.eq.s32.totalorder %s27, 0
      %p153 = por %p151, %p152
      %p154 = scmp.ne.s32.totalorder %s142, %s143
      %p155 = scmp.eq.s32.totalorder %s28, 1
      %p156 = por %p154, %p155
      %p158 = scmp.ne.s32.totalorder %s143, %s157
      %p159 = scmp.eq.s32.totalorder %s28, 0
      %p160 = por %p158, %p159
      %s162 = sadd.s32 %s161, 1
      %p165 = scmp.eq.s32.totalorder %s22, 1
      %p166 = scmp.ne.s32.totalorder %s161, %s163
      %p167 = scmp.eq.s32.totalorder %s22, 0
      %p168 = por %p166, %p167
      %p169 = scmp.ne.s32.totalorder %s161, %s163
      %p170 = scmp.eq.s32.totalorder %s27, 1
      %p171 = por %p169, %p170
      %p172 = scmp.ne.s32.totalorder %s163, %s164
      %p173 = scmp.eq.s32.totalorder %s27, 0
      %p174 = por %p172, %p173
      %p175 = scmp.ne.s32.totalorder %s163, %s164
      %p176 = scmp.eq.s32.totalorder %s28, 1
      %p177 = por %p175, %p176
      %p179 = scmp.ne.s32.totalorder %s164, %s178
      %p180 = scmp.eq.s32.totalorder %s28, 0
      %p181 = por %p179, %p180
      %s182 = ssub.s32 %s22, %s29
      %p183 = scmp.eq.s32.totalorder %s182, 0
      %s185 = sadd.s32 %s184, 1
      %s186 = scalar_select %p183, %s184, %s185
      %p189 = pneg %p183
      %p190 = scmp.eq.s32.totalorder %s22, 1
      %p191 = por %p189, %p190
      %p192 = scmp.ne.s32.totalorder %s184, %s187
      %p193 = scmp.eq.s32.totalorder %s22, 0
      %p194 = por %p192, %p193
      %p195 = scmp.ne.s32.totalorder %s184, %s187
      %p196 = scmp.eq.s32.totalorder %s27, 1
      %p197 = por %p195, %p196
      %p198 = scmp.ne.s32.totalorder %s187, %s188
      %p199 = scmp.eq.s32.totalorder %s27, 0
      %p200 = por %p198, %p199
      %p201 = scmp.ne.s32.totalorder %s187, %s188
      %p202 = scmp.eq.s32.totalorder %s28, 1
      %p203 = por %p201, %p202
      %p205 = scmp.ne.s32.totalorder %s188, %s204
      %p206 = scmp.eq.s32.totalorder %s28, 0
      %p207 = por %p205, %p206
      %p208 = scmp.le.s32.totalorder 1, %s22
      %p209 = scmp.lt.s32.totalorder %s22, 3
      %p210 = pnand %p208, %p209
      %p211 = pneg %p210
      // Predicated region
      $region9: #{mlp_forward.1} parent=5 // pred_check
        _
      $region10: #{mlp_forward.1} parent=5 // pred_check_branch
        %213 = sbr.rel (%p210) target = $region12
      $region11: #{mlp_forward.1} parent=5 // pred_region
        %s214 = ssub.s32 %s22, 1
        // Predicated region
        $region13: #{mlp_forward.1} parent=11 // pred_check
          %p215 = pneg %p69
        $region14: #{mlp_forward.1} parent=11 // pred_check_branch
          %217 = sbr.rel (%p215) target = $region16
        $region15: #{mlp_forward.1} parent=11 // pred_region
          %s219 = ssub.s32 25088, 25088
          %220 = vsyncadd [#allocation6], %s219
          %s221 = sshll.u32 [#allocation5], 4
          %s222 = int_to_ptr.vmem [resolvable:$true] %s221
          %227 = dma.hbm_to_vmem [thread:$0]  %s1, 25088, %s222, [#allocation6], 256, 256, 16
        $region16: #{mlp_forward.1} parent=11 // pred_fallthru
          _
        // Predicated region
        $region17: #{mlp_forward.1} parent=11 // pred_check
          %p228 = pneg %p90
        $region18: #{mlp_forward.1} parent=11 // pred_check_branch
          %230 = sbr.rel (%p228) target = $region20
        $region19: #{mlp_forward.1} parent=11 // pred_region
          %s232 = ssub.s32 32, 32
          %233 = vsyncadd [#allocation6], %s232
          %s235 = sshll.u32 [#allocation7], 4
          %s236 = int_to_ptr.vmem [resolvable:$true] %s235
          %238 = dma.hbm_to_vmem [thread:$0]  %s2, 32, %s236, [#allocation6]
        $region20: #{mlp_forward.1} parent=11 // pred_fallthru
          _
        // Predicated region
        $region21: #{mlp_forward.1} parent=11 // pred_check
          %p239 = pneg %p111
        $region22: #{mlp_forward.1} parent=11 // pred_check_branch
          %241 = sbr.rel (%p239) target = $region24
        $region23: #{mlp_forward.1} parent=11 // pred_region
          %s243 = ssub.s32 4096, 4096
          %244 = vsyncadd [#allocation9], %s243
          %s245 = sshll.u32 [#allocation8], 4
          %s246 = int_to_ptr.vmem [resolvable:$true] %s245
          %251 = dma.hbm_to_vmem [thread:$0]  %s3, 4096, %s246, [#allocation9], 128, 128, 8
        $region24: #{mlp_forward.1} parent=11 // pred_fallthru
          _
        // Predicated region
        $region25: #{mlp_forward.1} parent=11 // pred_check
          %p252 = pneg %p132
        $region26: #{mlp_forward.1} parent=11 // pred_check_branch
          %254 = sbr.rel (%p252) target = $region28
        $region27: #{mlp_forward.1} parent=11 // pred_region
          %s256 = ssub.s32 16, 16
          %257 = vsyncadd [#allocation9], %s256
          %s259 = sshll.u32 [#allocation10], 4
          %s260 = int_to_ptr.vmem [resolvable:$true] %s259
          %262 = dma.hbm_to_vmem [thread:$0]  %s4, 16, %s260, [#allocation9]
        $region28: #{mlp_forward.1} parent=11 // pred_fallthru
          _
        // Predicated region
        $region29: #{mlp_forward.1} parent=11 // pred_check
          %p263 = pneg %p153
        $region30: #{mlp_forward.1} parent=11 // pred_check_branch
          %265 = sbr.rel (%p263) target = $region32
        $region31: #{mlp_forward.1} parent=11 // pred_region
          %s267 = ssub.s32 2048, 2048
          %268 = vsyncadd [#allocation12], %s267
          %s269 = sshll.u32 [#allocation11], 4
          %s270 = int_to_ptr.vmem [resolvable:$true] %s269
          %275 = dma.hbm_to_vmem [thread:$0]  %s5, 2048, %s270, [#allocation12], 128, 128, 8
        $region32: #{mlp_forward.1} parent=11 // pred_fallthru
          _
        // Predicated region
        $region33: #{mlp_forward.1} parent=11 // pred_check
          %p276 = pneg %p174
        $region34: #{mlp_forward.1} parent=11 // pred_check_branch
          %278 = sbr.rel (%p276) target = $region36
        $region35: #{mlp_forward.1} parent=11 // pred_region
          %s280 = ssub.s32 16, 16
          %281 = vsyncadd [#allocation12], %s280
          %s283 = sshll.u32 [#allocation13], 4
          %s284 = int_to_ptr.vmem [resolvable:$true] %s283
          %286 = dma.hbm_to_vmem [thread:$0]  %s6, 16, %s284, [#allocation12]
        $region36: #{mlp_forward.1} parent=11 // pred_fallthru
          _
      $region12: #{mlp_forward.1} parent=5 // pred_fallthru
        _
      %p287 = scmp.lt.s32.totalorder %s22, 2
      // Predicated region
      $region37: #{mlp_forward.1} parent=5 // pred_check
        %p288 = pneg %p287
      $region38: #{mlp_forward.1} parent=5 // pred_check_branch
        %290 = sbr.rel (%p288) target = $region40
      $region39: #{mlp_forward.1} parent=5 // pred_region
        // Predicated region
        $region41: #{mlp_forward.1} parent=39 // pred_check
          %p291 = pneg %p42
        $region42: #{mlp_forward.1} parent=39 // pred_check_branch
          %293 = sbr.rel (%p291) target = $region44
        $region43: #{mlp_forward.1} parent=39 // pred_region
          %s294 = sand.u32 %s32, 1
          %s295 = scalar_lea.sflag [#allocation3], %s294
          %s296 = sand.u32 %s32, 1
          %s297 = smul.addr %s296, 1792
          %s298 = scalar_lea.vmem [#allocation2], %s297
          %s299 = smul.u32 32, %s22
          %s301 = ssub.s32 28672, 28672
          %302 = vsyncadd %s295, %s301
          %s303 = smul.addr %s299, 7
          %s304 = smul.addr %s303, 128
          %s305 = scalar_lea.hbm %s0, %s304
          %s306 = sshll.u32 %s298, 4
          %s307 = int_to_ptr.vmem [resolvable:$true] %s306
          %312 = dma.hbm_to_vmem [thread:$0]  %s305, 28672, %s307, %s295, 896, 896, 56
        $region44: #{mlp_forward.1} parent=39 // pred_fallthru
          _
      $region40: #{mlp_forward.1} parent=5 // pred_fallthru
        _
      %p313 = scmp.le.s32.totalorder 1, %s22
      %p314 = scmp.lt.s32.totalorder %s22, 3
      %p315 = pnand %p313, %p314
      %p316 = pneg %p315
      // Predicated region
      $region45: #{mlp_forward.1} parent=5 // pred_check
        _
      $region46: #{mlp_forward.1} parent=5 // pred_check_branch
        %318 = sbr.rel (%p315) target = $region48
      $region47: #{mlp_forward.1} parent=5 // pred_region
        %s319 = ssub.s32 %s22, 1
        %s320 = sand.u32 %s35, 1
        %s321 = scalar_lea.sflag [#allocation3], %s320
        %s322 = sand.u32 %s35, 1
        %s323 = smul.addr %s322, 1792
        %s324 = scalar_lea.vmem [#allocation2], %s323
        // Predicated region
        $region49: #{mlp_forward.1} parent=47 // pred_check
          %p325 = pneg %p48
        $region50: #{mlp_forward.1} parent=47 // pred_check_branch
          %327 = sbr.rel (%p325) target = $region52
        $region51: #{mlp_forward.1} parent=47 // pred_region
          %328 = dma.done %s321, 28672
        $region52: #{mlp_forward.1} parent=47 // pred_fallthru
          _
        // Predicated region
        $region53: #{mlp_forward.1} parent=47 // pred_check
          %p329 = pneg %p69
        $region54: #{mlp_forward.1} parent=47 // pred_check_branch
          %331 = sbr.rel (%p329) target = $region56
        $region55: #{mlp_forward.1} parent=47 // pred_region
          %332 = dma.done [#allocation6], 25088
        $region56: #{mlp_forward.1} parent=47 // pred_fallthru
          _
        // Predicated region
        $region57: #{mlp_forward.1} parent=47 // pred_check
          %p333 = pneg %p90
        $region58: #{mlp_forward.1} parent=47 // pred_check_branch
          %335 = sbr.rel (%p333) target = $region60
        $region59: #{mlp_forward.1} parent=47 // pred_region
          %336 = dma.done [#allocation6], 32
        $region60: #{mlp_forward.1} parent=47 // pred_fallthru
          _
        // Predicated region
        $region61: #{mlp_forward.1} parent=47 // pred_check
          %p337 = pneg %p111
        $region62: #{mlp_forward.1} parent=47 // pred_check_branch
          %339 = sbr.rel (%p337) target = $region64
        $region63: #{mlp_forward.1} parent=47 // pred_region
          %340 = dma.done [#allocation9], 4096
        $region64: #{mlp_forward.1} parent=47 // pred_fallthru
          _
        // Predicated region
        $region65: #{mlp_forward.1} parent=47 // pred_check
          %p341 = pneg %p132
        $region66: #{mlp_forward.1} parent=47 // pred_check_branch
          %343 = sbr.rel (%p341) target = $region68
        $region67: #{mlp_forward.1} parent=47 // pred_region
          %344 = dma.done [#allocation9], 16
        $region68: #{mlp_forward.1} parent=47 // pred_fallthru
          _
        // Predicated region
        $region69: #{mlp_forward.1} parent=47 // pred_check
          %p345 = pneg %p153
        $region70: #{mlp_forward.1} parent=47 // pred_check_branch
          %347 = sbr.rel (%p345) target = $region72
        $region71: #{mlp_forward.1} parent=47 // pred_region
          %348 = dma.done [#allocation12], 2048
        $region72: #{mlp_forward.1} parent=47 // pred_fallthru
          _
        // Predicated region
        $region73: #{mlp_forward.1} parent=47 // pred_check
          %p349 = pneg %p174
        $region74: #{mlp_forward.1} parent=47 // pred_check_branch
          %351 = sbr.rel (%p349) target = $region76
        $region75: #{mlp_forward.1} parent=47 // pred_region
          %352 = dma.done [#allocation12], 16
        $region76: #{mlp_forward.1} parent=47 // pred_fallthru
          _
        %s353 = sand.u32 %s35, 1
        %s354 = scalar_lea.sflag [#allocation3], %s353
        %s355 = sand.u32 %s35, 1
        %s356 = smul.addr %s355, 1792
        %s357 = scalar_lea.vmem [#allocation2], %s356
        %p358 = pneg %p48
        %p359 = pneg %p45
        %p360 = pneg %p69
        %p361 = pneg %p66
        %p362 = pneg %p90
        %p363 = pneg %p87
        %p364 = pneg %p111
        %p365 = pneg %p108
        %p366 = pneg %p132
        %p367 = pneg %p129
        %p368 = pneg %p153
        %p369 = pneg %p150
        %p370 = pneg %p174
        %p371 = pneg %p171
        %p372 = pneg %p200
        %p373 = pneg %p197
        %s374 = sand.u32 %s187, 1
        %s375 = scalar_lea.sflag [#allocation4], %s374
        %s376 = sand.u32 %s187, 1
        %s377 = smul.addr %s376, 256
        %s378 = scalar_lea.vmem [#allocation14], %s377
        %s379 = smul.u32 32, %s27
        %s380 = smul.u32 32, %s27
        %v381 = vld [vmem:[%s324] sm:$0xff]
        %v382 = vld [vmem:[%s324 + $0x8] sm:$0xff]
        %v383 = vld [vmem:[%s324 + $0x10] sm:$0xff]
        %v384 = vld [vmem:[%s324 + $0x18] sm:$0xff]
        %v385 = vld [vmem:[%s324 + $0x20] sm:$0xff]
        %v386 = vld [vmem:[%s324 + $0x28] sm:$0xff]
        %v387 = vld [vmem:[%s324 + $0x30] sm:$0xff]
        %v388 = vld [vmem:[%s324 + $0x38] sm:$0xff]
        %v389 = vld [vmem:[%s324 + $0x40] sm:$0xff]
        %v390 = vld [vmem:[%s324 + $0x48] sm:$0xff]
        %v391 = vld [vmem:[%s324 + $0x50] sm:$0xff]
        %v392 = vld [vmem:[%s324 + $0x58] sm:$0xff]
        %v393 = vld [vmem:[%s324 + $0x60] sm:$0xff]
        %v394 = vld [vmem:[%s324 + $0x68] sm:$0xff]
        %v395 = vld [vmem:[%s324 + $0x70] sm:$0xff]
        %v396 = vld [vmem:[%s324 + $0x78] sm:$0xff]
        %v397 = vld [vmem:[%s324 + $0x80] sm:$0xff]
        %v398 = vld [vmem:[%s324 + $0x88] sm:$0xff]
        %v399 = vld [vmem:[%s324 + $0x90] sm:$0xff]
        %v400 = vld [vmem:[%s324 + $0x98] sm:$0xff]
        %v401 = vld [vmem:[%s324 + $0xa0] sm:$0xff]
        %v402 = vld [vmem:[%s324 + $0xa8] sm:$0xff]
        %v403 = vld [vmem:[%s324 + $0xb0] sm:$0xff]
        %v404 = vld [vmem:[%s324 + $0xb8] sm:$0xff]
        %v405 = vld [vmem:[%s324 + $0xc0] sm:$0xff]
        %v406 = vld [vmem:[%s324 + $0xc8] sm:$0xff]
        %v407 = vld [vmem:[%s324 + $0xd0] sm:$0xff]
        %v408 = vld [vmem:[%s324 + $0xd8] sm:$0xff]
        %v409 = vld [vmem:[%s324 + $0xe0] sm:$0xff]
        %v410 = vld [vmem:[%s324 + $0xe8] sm:$0xff]
        %v411 = vld [vmem:[%s324 + $0xf0] sm:$0xff]
        %v412 = vld [vmem:[%s324 + $0xf8] sm:$0xff]
        %v413 = vld [vmem:[%s324 + $0x100] sm:$0xff]
        %v414 = vld [vmem:[%s324 + $0x108] sm:$0xff]
        %v415 = vld [vmem:[%s324 + $0x110] sm:$0xff]
        %v416 = vld [vmem:[%s324 + $0x118] sm:$0xff]
        %v417 = vld [vmem:[%s324 + $0x120] sm:$0xff]
        %v418 = vld [vmem:[%s324 + $0x128] sm:$0xff]
        %v419 = vld [vmem:[%s324 + $0x130] sm:$0xff]
        %v420 = vld [vmem:[%s324 + $0x138] sm:$0xff]
        %v421 = vld [vmem:[%s324 + $0x140] sm:$0xff]
        %v422 = vld [vmem:[%s324 + $0x148] sm:$0xff]
        %v423 = vld [vmem:[%s324 + $0x150] sm:$0xff]
        %v424 = vld [vmem:[%s324 + $0x158] sm:$0xff]
        %v425 = vld [vmem:[%s324 + $0x160] sm:$0xff]
        %v426 = vld [vmem:[%s324 + $0x168] sm:$0xff]
        %v427 = vld [vmem:[%s324 + $0x170] sm:$0xff]
        %v428 = vld [vmem:[%s324 + $0x178] sm:$0xff]
        %v429 = vld [vmem:[%s324 + $0x180] sm:$0xff]
        %v430 = vld [vmem:[%s324 + $0x188] sm:$0xff]
        %v431 = vld [vmem:[%s324 + $0x190] sm:$0xff]
        %v432 = vld [vmem:[%s324 + $0x198] sm:$0xff]
        %v433 = vld [vmem:[%s324 + $0x1a0] sm:$0xff]
        %v434 = vld [vmem:[%s324 + $0x1a8] sm:$0xff]
        %v435 = vld [vmem:[%s324 + $0x1b0] sm:$0xff]
        %v436 = vld [vmem:[%s324 + $0x1b8] sm:$0xff]
        %v437 = vld [vmem:[%s324 + $0x1c0] sm:$0xff]
        %v438 = vld [vmem:[%s324 + $0x1c8] sm:$0xff]
        %v439 = vld [vmem:[%s324 + $0x1d0] sm:$0xff]
        %v440 = vld [vmem:[%s324 + $0x1d8] sm:$0xff]
        %v441 = vld [vmem:[%s324 + $0x1e0] sm:$0xff]
        %v442 = vld [vmem:[%s324 + $0x1e8] sm:$0xff]
        %v443 = vld [vmem:[%s324 + $0x1f0] sm:$0xff]
        %v444 = vld [vmem:[%s324 + $0x1f8] sm:$0xff]
        %v445 = vld [vmem:[%s324 + $0x200] sm:$0xff]
        %v446 = vld [vmem:[%s324 + $0x208] sm:$0xff]
        %v447 = vld [vmem:[%s324 + $0x210] sm:$0xff]
        %v448 = vld [vmem:[%s324 + $0x218] sm:$0xff]
        %v449 = vld [vmem:[%s324 + $0x220] sm:$0xff]
        %v450 = vld [vmem:[%s324 + $0x228] sm:$0xff]
        %v451 = vld [vmem:[%s324 + $0x230] sm:$0xff]
        %v452 = vld [vmem:[%s324 + $0x238] sm:$0xff]
        %v453 = vld [vmem:[%s324 + $0x240] sm:$0xff]
        %v454 = vld [vmem:[%s324 + $0x248] sm:$0xff]
        %v455 = vld [vmem:[%s324 + $0x250] sm:$0xff]
        %v456 = vld [vmem:[%s324 + $0x258] sm:$0xff]
        %v457 = vld [vmem:[%s324 + $0x260] sm:$0xff]
        %v458 = vld [vmem:[%s324 + $0x268] sm:$0xff]
        %v459 = vld [vmem:[%s324 + $0x270] sm:$0xff]
        %v460 = vld [vmem:[%s324 + $0x278] sm:$0xff]
        %v461 = vld [vmem:[%s324 + $0x280] sm:$0xff]
        %v462 = vld [vmem:[%s324 + $0x288] sm:$0xff]
        %v463 = vld [vmem:[%s324 + $0x290] sm:$0xff]
        %v464 = vld [vmem:[%s324 + $0x298] sm:$0xff]
        %v465 = vld [vmem:[%s324 + $0x2a0] sm:$0xff]
        %v466 = vld [vmem:[%s324 + $0x2a8] sm:$0xff]
        %v467 = vld [vmem:[%s324 + $0x2b0] sm:$0xff]
        %v468 = vld [vmem:[%s324 + $0x2b8] sm:$0xff]
        %v469 = vld [vmem:[%s324 + $0x2c0] sm:$0xff]
        %v470 = vld [vmem:[%s324 + $0x2c8] sm:$0xff]
        %v471 = vld [vmem:[%s324 + $0x2d0] sm:$0xff]
        %v472 = vld [vmem:[%s324 + $0x2d8] sm:$0xff]
        %v473 = vld [vmem:[%s324 + $0x2e0] sm:$0xff]
        %v474 = vld [vmem:[%s324 + $0x2e8] sm:$0xff]
        %v475 = vld [vmem:[%s324 + $0x2f0] sm:$0xff]
        %v476 = vld [vmem:[%s324 + $0x2f8] sm:$0xff]
        %v477 = vld [vmem:[%s324 + $0x300] sm:$0xff]
        %v478 = vld [vmem:[%s324 + $0x308] sm:$0xff]
        %v479 = vld [vmem:[%s324 + $0x310] sm:$0xff]
        %v480 = vld [vmem:[%s324 + $0x318] sm:$0xff]
        %v481 = vld [vmem:[%s324 + $0x320] sm:$0xff]
        %v482 = vld [vmem:[%s324 + $0x328] sm:$0xff]
        %v483 = vld [vmem:[%s324 + $0x330] sm:$0xff]
        %v484 = vld [vmem:[%s324 + $0x338] sm:$0xff]
        %v485 = vld [vmem:[%s324 + $0x340] sm:$0xff]
        %v486 = vld [vmem:[%s324 + $0x348] sm:$0xff]
        %v487 = vld [vmem:[%s324 + $0x350] sm:$0xff]
        %v488 = vld [vmem:[%s324 + $0x358] sm:$0xff]
        %v489 = vld [vmem:[%s324 + $0x360] sm:$0xff]
        %v490 = vld [vmem:[%s324 + $0x368] sm:$0xff]
        %v491 = vld [vmem:[%s324 + $0x370] sm:$0xff]
        %v492 = vld [vmem:[%s324 + $0x378] sm:$0xff]
        %v493 = vld [vmem:[%s324 + $0x380] sm:$0xff]
        %v494 = vld [vmem:[%s324 + $0x388] sm:$0xff]
        %v495 = vld [vmem:[%s324 + $0x390] sm:$0xff]
        %v496 = vld [vmem:[%s324 + $0x398] sm:$0xff]
        %v497 = vld [vmem:[%s324 + $0x3a0] sm:$0xff]
        %v498 = vld [vmem:[%s324 + $0x3a8] sm:$0xff]
        %v499 = vld [vmem:[%s324 + $0x3b0] sm:$0xff]
        %v500 = vld [vmem:[%s324 + $0x3b8] sm:$0xff]
        %v501 = vld [vmem:[%s324 + $0x3c0] sm:$0xff]
        %v502 = vld [vmem:[%s324 + $0x3c8] sm:$0xff]
        %v503 = vld [vmem:[%s324 + $0x3d0] sm:$0xff]
        %v504 = vld [vmem:[%s324 + $0x3d8] sm:$0xff]
        %v505 = vld [vmem:[%s324 + $0x3e0] sm:$0xff]
        %v506 = vld [vmem:[%s324 + $0x3e8] sm:$0xff]
        %v507 = vld [vmem:[%s324 + $0x3f0] sm:$0xff]
        %v508 = vld [vmem:[%s324 + $0x3f8] sm:$0xff]
        %v509 = vld [vmem:[%s324 + $0x400] sm:$0xff]
        %v510 = vld [vmem:[%s324 + $0x408] sm:$0xff]
        %v511 = vld [vmem:[%s324 + $0x410] sm:$0xff]
        %v512 = vld [vmem:[%s324 + $0x418] sm:$0xff]
        %v513 = vld [vmem:[%s324 + $0x420] sm:$0xff]
        %v514 = vld [vmem:[%s324 + $0x428] sm:$0xff]
        %v515 = vld [vmem:[%s324 + $0x430] sm:$0xff]
        %v516 = vld [vmem:[%s324 + $0x438] sm:$0xff]
        %v517 = vld [vmem:[%s324 + $0x440] sm:$0xff]
        %v518 = vld [vmem:[%s324 + $0x448] sm:$0xff]
        %v519 = vld [vmem:[%s324 + $0x450] sm:$0xff]
        %v520 = vld [vmem:[%s324 + $0x458] sm:$0xff]
        %v521 = vld [vmem:[%s324 + $0x460] sm:$0xff]
        %v522 = vld [vmem:[%s324 + $0x468] sm:$0xff]
        %v523 = vld [vmem:[%s324 + $0x470] sm:$0xff]
        %v524 = vld [vmem:[%s324 + $0x478] sm:$0xff]
        %v525 = vld [vmem:[%s324 + $0x480] sm:$0xff]
        %v526 = vld [vmem:[%s324 + $0x488] sm:$0xff]
        %v527 = vld [vmem:[%s324 + $0x490] sm:$0xff]
        %v528 = vld [vmem:[%s324 + $0x498] sm:$0xff]
        %v529 = vld [vmem:[%s324 + $0x4a0] sm:$0xff]
        %v530 = vld [vmem:[%s324 + $0x4a8] sm:$0xff]
        %v531 = vld [vmem:[%s324 + $0x4b0] sm:$0xff]
        %v532 = vld [vmem:[%s324 + $0x4b8] sm:$0xff]
        %v533 = vld [vmem:[%s324 + $0x4c0] sm:$0xff]
        %v534 = vld [vmem:[%s324 + $0x4c8] sm:$0xff]
        %v535 = vld [vmem:[%s324 + $0x4d0] sm:$0xff]
        %v536 = vld [vmem:[%s324 + $0x4d8] sm:$0xff]
        %v537 = vld [vmem:[%s324 + $0x4e0] sm:$0xff]
        %v538 = vld [vmem:[%s324 + $0x4e8] sm:$0xff]
        %v539 = vld [vmem:[%s324 + $0x4f0] sm:$0xff]
        %v540 = vld [vmem:[%s324 + $0x4f8] sm:$0xff]
        %v541 = vld [vmem:[%s324 + $0x500] sm:$0xff]
        %v542 = vld [vmem:[%s324 + $0x508] sm:$0xff]
        %v543 = vld [vmem:[%s324 + $0x510] sm:$0xff]
        %v544 = vld [vmem:[%s324 + $0x518] sm:$0xff]
        %v545 = vld [vmem:[%s324 + $0x520] sm:$0xff]
        %v546 = vld [vmem:[%s324 + $0x528] sm:$0xff]
        %v547 = vld [vmem:[%s324 + $0x530] sm:$0xff]
        %v548 = vld [vmem:[%s324 + $0x538] sm:$0xff]
        %v549 = vld [vmem:[%s324 + $0x540] sm:$0xff]
        %v550 = vld [vmem:[%s324 + $0x548] sm:$0xff]
        %v551 = vld [vmem:[%s324 + $0x550] sm:$0xff]
        %v552 = vld [vmem:[%s324 + $0x558] sm:$0xff]
        %v553 = vld [vmem:[%s324 + $0x560] sm:$0xff]
        %v554 = vld [vmem:[%s324 + $0x568] sm:$0xff]
        %v555 = vld [vmem:[%s324 + $0x570] sm:$0xff]
        %v556 = vld [vmem:[%s324 + $0x578] sm:$0xff]
        %v557 = vld [vmem:[%s324 + $0x580] sm:$0xff]
        %v558 = vld [vmem:[%s324 + $0x588] sm:$0xff]
        %v559 = vld [vmem:[%s324 + $0x590] sm:$0xff]
        %v560 = vld [vmem:[%s324 + $0x598] sm:$0xff]
        %v561 = vld [vmem:[%s324 + $0x5a0] sm:$0xff]
        %v562 = vld [vmem:[%s324 + $0x5a8] sm:$0xff]
        %v563 = vld [vmem:[%s324 + $0x5b0] sm:$0xff]
        %v564 = vld [vmem:[%s324 + $0x5b8] sm:$0xff]
        %v565 = vld [vmem:[%s324 + $0x5c0] sm:$0xff]
        %v566 = vld [vmem:[%s324 + $0x5c8] sm:$0xff]
        %v567 = vld [vmem:[%s324 + $0x5d0] sm:$0xff]
        %v568 = vld [vmem:[%s324 + $0x5d8] sm:$0xff]
        %v569 = vld [vmem:[%s324 + $0x5e0] sm:$0xff]
        %v570 = vld [vmem:[%s324 + $0x5e8] sm:$0xff]
        %v571 = vld [vmem:[%s324 + $0x5f0] sm:$0xff]
        %v572 = vld [vmem:[%s324 + $0x5f8] sm:$0xff]
        %v573 = vld [vmem:[%s324 + $0x600] sm:$0xff]
        %v574 = vld [vmem:[%s324 + $0x608] sm:$0xff]
        %v575 = vld [vmem:[%s324 + $0x610] sm:$0xff]
        %v576 = vld [vmem:[%s324 + $0x618] sm:$0xff]
        %v577 = vld [vmem:[%s324 + $0x620] sm:$0xff]
        %v578 = vld [vmem:[%s324 + $0x628] sm:$0xff]
        %v579 = vld [vmem:[%s324 + $0x630] sm:$0xff]
        %v580 = vld [vmem:[%s324 + $0x638] sm:$0xff]
        %v581 = vld [vmem:[%s324 + $0x640] sm:$0xff]
        %v582 = vld [vmem:[%s324 + $0x648] sm:$0xff]
        %v583 = vld [vmem:[%s324 + $0x650] sm:$0xff]
        %v584 = vld [vmem:[%s324 + $0x658] sm:$0xff]
        %v585 = vld [vmem:[%s324 + $0x660] sm:$0xff]
        %v586 = vld [vmem:[%s324 + $0x668] sm:$0xff]
        %v587 = vld [vmem:[%s324 + $0x670] sm:$0xff]
        %v588 = vld [vmem:[%s324 + $0x678] sm:$0xff]
        %v589 = vld [vmem:[%s324 + $0x680] sm:$0xff]
        %v590 = vld [vmem:[%s324 + $0x688] sm:$0xff]
        %v591 = vld [vmem:[%s324 + $0x690] sm:$0xff]
        %v592 = vld [vmem:[%s324 + $0x698] sm:$0xff]
        %v593 = vld [vmem:[%s324 + $0x6a0] sm:$0xff]
        %v594 = vld [vmem:[%s324 + $0x6a8] sm:$0xff]
        %v595 = vld [vmem:[%s324 + $0x6b0] sm:$0xff]
        %v596 = vld [vmem:[%s324 + $0x6b8] sm:$0xff]
        %v597 = vld [vmem:[%s324 + $0x6c0] sm:$0xff]
        %v598 = vld [vmem:[%s324 + $0x6c8] sm:$0xff]
        %v599 = vld [vmem:[%s324 + $0x6d0] sm:$0xff]
        %v600 = vld [vmem:[%s324 + $0x6d8] sm:$0xff]
        %v601 = vld [vmem:[%s324 + $0x6e0] sm:$0xff]
        %v602 = vld [vmem:[%s324 + $0x6e8] sm:$0xff]
        %v603 = vld [vmem:[%s324 + $0x6f0] sm:$0xff]
        %v604 = vld [vmem:[%s324 + $0x6f8] sm:$0xff]
        %v605 = vld [vmem:[#allocation5] sm:$0xff]
        %v606 = vld [vmem:[#allocation5 + $0x8] sm:$0xff]
        %v607 = vld [vmem:[#allocation5 + $0x10] sm:$0xff]
        %v608 = vld [vmem:[#allocation5 + $0x18] sm:$0xff]
        %v609 = vld [vmem:[#allocation5 + $0x20] sm:$0xff]
        %v610 = vld [vmem:[#allocation5 + $0x28] sm:$0xff]
        %v611 = vld [vmem:[#allocation5 + $0x30] sm:$0xff]
        %v612 = vld [vmem:[#allocation5 + $0x38] sm:$0xff]
        %v613 = vld [vmem:[#allocation5 + $0x40] sm:$0xff]
        %v614 = vld [vmem:[#allocation5 + $0x48] sm:$0xff]
        %v615 = vld [vmem:[#allocation5 + $0x50] sm:$0xff]
        %v616 = vld [vmem:[#allocation5 + $0x58] sm:$0xff]
        %v617 = vld [vmem:[#allocation5 + $0x60] sm:$0xff]
        %v618 = vld [vmem:[#allocation5 + $0x68] sm:$0xff]
        %v619 = vld [vmem:[#allocation5 + $0x70] sm:$0xff]
        %v620 = vld [vmem:[#allocation5 + $0x78] sm:$0xff]
        %v621 = vld [vmem:[#allocation5 + $0x80] sm:$0xff]
        %v622 = vld [vmem:[#allocation5 + $0x88] sm:$0xff]
        %v623 = vld [vmem:[#allocation5 + $0x90] sm:$0xff]
        %v624 = vld [vmem:[#allocation5 + $0x98] sm:$0xff]
        %v625 = vld [vmem:[#allocation5 + $0xa0] sm:$0xff]
        %v626 = vld [vmem:[#allocation5 + $0xa8] sm:$0xff]
        %v627 = vld [vmem:[#allocation5 + $0xb0] sm:$0xff]
        %v628 = vld [vmem:[#allocation5 + $0xb8] sm:$0xff]
        %v629 = vld [vmem:[#allocation5 + $0xc0] sm:$0xff]
        %v630 = vld [vmem:[#allocation5 + $0xc8] sm:$0xff]
        %v631 = vld [vmem:[#allocation5 + $0xd0] sm:$0xff]
        %v632 = vld [vmem:[#allocation5 + $0xd8] sm:$0xff]
        %v633 = vld [vmem:[#allocation5 + $0xe0] sm:$0xff]
        %v634 = vld [vmem:[#allocation5 + $0xe8] sm:$0xff]
        %v635 = vld [vmem:[#allocation5 + $0xf0] sm:$0xff]
        %v636 = vld [vmem:[#allocation5 + $0xf8] sm:$0xff]
        %v637 = vld [vmem:[#allocation5 + $0x100] sm:$0xff]
        %v638 = vld [vmem:[#allocation5 + $0x108] sm:$0xff]
        %v639 = vld [vmem:[#allocation5 + $0x110] sm:$0xff]
        %v640 = vld [vmem:[#allocation5 + $0x118] sm:$0xff]
        %v641 = vld [vmem:[#allocation5 + $0x120] sm:$0xff]
        %v642 = vld [vmem:[#allocation5 + $0x128] sm:$0xff]
        %v643 = vld [vmem:[#allocation5 + $0x130] sm:$0xff]
        %v644 = vld [vmem:[#allocation5 + $0x138] sm:$0xff]
        %v645 = vld [vmem:[#allocation5 + $0x140] sm:$0xff]
        %v646 = vld [vmem:[#allocation5 + $0x148] sm:$0xff]
        %v647 = vld [vmem:[#allocation5 + $0x150] sm:$0xff]
        %v648 = vld [vmem:[#allocation5 + $0x158] sm:$0xff]
        %v649 = vld [vmem:[#allocation5 + $0x160] sm:$0xff]
        %v650 = vld [vmem:[#allocation5 + $0x168] sm:$0xff]
        %v651 = vld [vmem:[#allocation5 + $0x170] sm:$0xff]
        %v652 = vld [vmem:[#allocation5 + $0x178] sm:$0xff]
        %v653 = vld [vmem:[#allocation5 + $0x180] sm:$0xff]
        %v654 = vld [vmem:[#allocation5 + $0x188] sm:$0xff]
        %v655 = vld [vmem:[#allocation5 + $0x190] sm:$0xff]
        %v656 = vld [vmem:[#allocation5 + $0x198] sm:$0xff]
        %v657 = vld [vmem:[#allocation5 + $0x1a0] sm:$0xff]
        %v658 = vld [vmem:[#allocation5 + $0x1a8] sm:$0xff]
        %v659 = vld [vmem:[#allocation5 + $0x1b0] sm:$0xff]
        %v660 = vld [vmem:[#allocation5 + $0x1b8] sm:$0xff]
        %v661 = vld [vmem:[#allocation5 + $0x1c0] sm:$0xff]
        %v662 = vld [vmem:[#allocation5 + $0x1c8] sm:$0xff]
        %v663 = vld [vmem:[#allocation5 + $0x1d0] sm:$0xff]
        %v664 = vld [vmem:[#allocation5 + $0x1d8] sm:$0xff]
        %v665 = vld [vmem:[#allocation5 + $0x1e0] sm:$0xff]
        %v666 = vld [vmem:[#allocation5 + $0x1e8] sm:$0xff]
        %v667 = vld [vmem:[#allocation5 + $0x1f0] sm:$0xff]
        %v668 = vld [vmem:[#allocation5 + $0x1f8] sm:$0xff]
        %v669 = vld [vmem:[#allocation5 + $0x200] sm:$0xff]
        %v670 = vld [vmem:[#allocation5 + $0x208] sm:$0xff]
        %v671 = vld [vmem:[#allocation5 + $0x210] sm:$0xff]
        %v672 = vld [vmem:[#allocation5 + $0x218] sm:$0xff]
        %v673 = vld [vmem:[#allocation5 + $0x220] sm:$0xff]
        %v674 = vld [vmem:[#allocation5 + $0x228] sm:$0xff]
        %v675 = vld [vmem:[#allocation5 + $0x230] sm:$0xff]
        %v676 = vld [vmem:[#allocation5 + $0x238] sm:$0xff]
        %v677 = vld [vmem:[#allocation5 + $0x240] sm:$0xff]
        %v678 = vld [vmem:[#allocation5 + $0x248] sm:$0xff]
        %v679 = vld [vmem:[#allocation5 + $0x250] sm:$0xff]
        %v680 = vld [vmem:[#allocation5 + $0x258] sm:$0xff]
        %v681 = vld [vmem:[#allocation5 + $0x260] sm:$0xff]
        %v682 = vld [vmem:[#allocation5 + $0x268] sm:$0xff]
        %v683 = vld [vmem:[#allocation5 + $0x270] sm:$0xff]
        %v684 = vld [vmem:[#allocation5 + $0x278] sm:$0xff]
        %v685 = vld [vmem:[#allocation5 + $0x280] sm:$0xff]
        %v686 = vld [vmem:[#allocation5 + $0x288] sm:$0xff]
        %v687 = vld [vmem:[#allocation5 + $0x290] sm:$0xff]
        %v688 = vld [vmem:[#allocation5 + $0x298] sm:$0xff]
        %v689 = vld [vmem:[#allocation5 + $0x2a0] sm:$0xff]
        %v690 = vld [vmem:[#allocation5 + $0x2a8] sm:$0xff]
        %v691 = vld [vmem:[#allocation5 + $0x2b0] sm:$0xff]
        %v692 = vld [vmem:[#allocation5 + $0x2b8] sm:$0xff]
        %v693 = vld [vmem:[#allocation5 + $0x2c0] sm:$0xff]
        %v694 = vld [vmem:[#allocation5 + $0x2c8] sm:$0xff]
        %v695 = vld [vmem:[#allocation5 + $0x2d0] sm:$0xff]
        %v696 = vld [vmem:[#allocation5 + $0x2d8] sm:$0xff]
        %v697 = vld [vmem:[#allocation5 + $0x2e0] sm:$0xff]
        %v698 = vld [vmem:[#allocation5 + $0x2e8] sm:$0xff]
        %v699 = vld [vmem:[#allocation5 + $0x2f0] sm:$0xff]
        %v700 = vld [vmem:[#allocation5 + $0x2f8] sm:$0xff]
        %v701 = vld [vmem:[#allocation5 + $0x300] sm:$0xff]
        %v702 = vld [vmem:[#allocation5 + $0x308] sm:$0xff]
        %v703 = vld [vmem:[#allocation5 + $0x310] sm:$0xff]
        %v704 = vld [vmem:[#allocation5 + $0x318] sm:$0xff]
        %v705 = vld [vmem:[#allocation5 + $0x320] sm:$0xff]
        %v706 = vld [vmem:[#allocation5 + $0x328] sm:$0xff]
        %v707 = vld [vmem:[#allocation5 + $0x330] sm:$0xff]
        %v708 = vld [vmem:[#allocation5 + $0x338] sm:$0xff]
        %v709 = vld [vmem:[#allocation5 + $0x340] sm:$0xff]
        %v710 = vld [vmem:[#allocation5 + $0x348] sm:$0xff]
        %v711 = vld [vmem:[#allocation5 + $0x350] sm:$0xff]
        %v712 = vld [vmem:[#allocation5 + $0x358] sm:$0xff]
        %v713 = vld [vmem:[#allocation5 + $0x360] sm:$0xff]
        %v714 = vld [vmem:[#allocation5 + $0x368] sm:$0xff]
        %v715 = vld [vmem:[#allocation5 + $0x370] sm:$0xff]
        %v716 = vld [vmem:[#allocation5 + $0x378] sm:$0xff]
        %v717 = vld [vmem:[#allocation5 + $0x380] sm:$0xff]
        %v718 = vld [vmem:[#allocation5 + $0x388] sm:$0xff]
        %v719 = vld [vmem:[#allocation5 + $0x390] sm:$0xff]
        %v720 = vld [vmem:[#allocation5 + $0x398] sm:$0xff]
        %v721 = vld [vmem:[#allocation5 + $0x3a0] sm:$0xff]
        %v722 = vld [vmem:[#allocation5 + $0x3a8] sm:$0xff]
        %v723 = vld [vmem:[#allocation5 + $0x3b0] sm:$0xff]
        %v724 = vld [vmem:[#allocation5 + $0x3b8] sm:$0xff]
        %v725 = vld [vmem:[#allocation5 + $0x3c0] sm:$0xff]
        %v726 = vld [vmem:[#allocation5 + $0x3c8] sm:$0xff]
        %v727 = vld [vmem:[#allocation5 + $0x3d0] sm:$0xff]
        %v728 = vld [vmem:[#allocation5 + $0x3d8] sm:$0xff]
        %v729 = vld [vmem:[#allocation5 + $0x3e0] sm:$0xff]
        %v730 = vld [vmem:[#allocation5 + $0x3e8] sm:$0xff]
        %v731 = vld [vmem:[#allocation5 + $0x3f0] sm:$0xff]
        %v732 = vld [vmem:[#allocation5 + $0x3f8] sm:$0xff]
        %v733 = vld [vmem:[#allocation5 + $0x400] sm:$0xff]
        %v734 = vld [vmem:[#allocation5 + $0x408] sm:$0xff]
        %v735 = vld [vmem:[#allocation5 + $0x410] sm:$0xff]
        %v736 = vld [vmem:[#allocation5 + $0x418] sm:$0xff]
        %v737 = vld [vmem:[#allocation5 + $0x420] sm:$0xff]
        %v738 = vld [vmem:[#allocation5 + $0x428] sm:$0xff]
        %v739 = vld [vmem:[#allocation5 + $0x430] sm:$0xff]
        %v740 = vld [vmem:[#allocation5 + $0x438] sm:$0xff]
        %v741 = vld [vmem:[#allocation5 + $0x440] sm:$0xff]
        %v742 = vld [vmem:[#allocation5 + $0x448] sm:$0xff]
        %v743 = vld [vmem:[#allocation5 + $0x450] sm:$0xff]
        %v744 = vld [vmem:[#allocation5 + $0x458] sm:$0xff]
        %v745 = vld [vmem:[#allocation5 + $0x460] sm:$0xff]
        %v746 = vld [vmem:[#allocation5 + $0x468] sm:$0xff]
        %v747 = vld [vmem:[#allocation5 + $0x470] sm:$0xff]
        %v748 = vld [vmem:[#allocation5 + $0x478] sm:$0xff]
        %v749 = vld [vmem:[#allocation5 + $0x480] sm:$0xff]
        %v750 = vld [vmem:[#allocation5 + $0x488] sm:$0xff]
        %v751 = vld [vmem:[#allocation5 + $0x490] sm:$0xff]
        %v752 = vld [vmem:[#allocation5 + $0x498] sm:$0xff]
        %v753 = vld [vmem:[#allocation5 + $0x4a0] sm:$0xff]
        %v754 = vld [vmem:[#allocation5 + $0x4a8] sm:$0xff]
        %v755 = vld [vmem:[#allocation5 + $0x4b0] sm:$0xff]
        %v756 = vld [vmem:[#allocation5 + $0x4b8] sm:$0xff]
        %v757 = vld [vmem:[#allocation5 + $0x4c0] sm:$0xff]
        %v758 = vld [vmem:[#allocation5 + $0x4c8] sm:$0xff]
        %v759 = vld [vmem:[#allocation5 + $0x4d0] sm:$0xff]
        %v760 = vld [vmem:[#allocation5 + $0x4d8] sm:$0xff]
        %v761 = vld [vmem:[#allocation5 + $0x4e0] sm:$0xff]
        %v762 = vld [vmem:[#allocation5 + $0x4e8] sm:$0xff]
        %v763 = vld [vmem:[#allocation5 + $0x4f0] sm:$0xff]
        %v764 = vld [vmem:[#allocation5 + $0x4f8] sm:$0xff]
        %v765 = vld [vmem:[#allocation5 + $0x500] sm:$0xff]
        %v766 = vld [vmem:[#allocation5 + $0x508] sm:$0xff]
        %v767 = vld [vmem:[#allocation5 + $0x510] sm:$0xff]
        %v768 = vld [vmem:[#allocation5 + $0x518] sm:$0xff]
        %v769 = vld [vmem:[#allocation5 + $0x520] sm:$0xff]
        %v770 = vld [vmem:[#allocation5 + $0x528] sm:$0xff]
        %v771 = vld [vmem:[#allocation5 + $0x530] sm:$0xff]
        %v772 = vld [vmem:[#allocation5 + $0x538] sm:$0xff]
        %v773 = vld [vmem:[#allocation5 + $0x540] sm:$0xff]
        %v774 = vld [vmem:[#allocation5 + $0x548] sm:$0xff]
        %v775 = vld [vmem:[#allocation5 + $0x550] sm:$0xff]
        %v776 = vld [vmem:[#allocation5 + $0x558] sm:$0xff]
        %v777 = vld [vmem:[#allocation5 + $0x560] sm:$0xff]
        %v778 = vld [vmem:[#allocation5 + $0x568] sm:$0xff]
        %v779 = vld [vmem:[#allocation5 + $0x570] sm:$0xff]
        %v780 = vld [vmem:[#allocation5 + $0x578] sm:$0xff]
        %v781 = vld [vmem:[#allocation5 + $0x580] sm:$0xff]
        %v782 = vld [vmem:[#allocation5 + $0x588] sm:$0xff]
        %v783 = vld [vmem:[#allocation5 + $0x590] sm:$0xff]
        %v784 = vld [vmem:[#allocation5 + $0x598] sm:$0xff]
        %v785 = vld [vmem:[#allocation5 + $0x5a0] sm:$0xff]
        %v786 = vld [vmem:[#allocation5 + $0x5a8] sm:$0xff]
        %v787 = vld [vmem:[#allocation5 + $0x5b0] sm:$0xff]
        %v788 = vld [vmem:[#allocation5 + $0x5b8] sm:$0xff]
        %v789 = vld [vmem:[#allocation5 + $0x5c0] sm:$0xff]
        %v790 = vld [vmem:[#allocation5 + $0x5c8] sm:$0xff]
        %v791 = vld [vmem:[#allocation5 + $0x5d0] sm:$0xff]
        %v792 = vld [vmem:[#allocation5 + $0x5d8] sm:$0xff]
        %v793 = vld [vmem:[#allocation5 + $0x5e0] sm:$0xff]
        %v794 = vld [vmem:[#allocation5 + $0x5e8] sm:$0xff]
        %v795 = vld [vmem:[#allocation5 + $0x5f0] sm:$0xff]
        %v796 = vld [vmem:[#allocation5 + $0x5f8] sm:$0xff]
        %v797 = vld [vmem:[#allocation5 + $0x600] sm:$0xff]
        %v798 = vld [vmem:[#allocation5 + $0x608] sm:$0xff]
        %v799 = vld [vmem:[#allocation5 + $0x610] sm:$0xff]
        %v800 = vld [vmem:[#allocation5 + $0x618] sm:$0xff]
        %v801 = vld [vmem:[#allocation7] sm:$0x3]
        %v803 = vlaneseq
        %v804 = vshrl.u32 %v803, 7
        %v805 = vsub.s32 0, %v804
        %v806 = vrot.slane %v801, %v805
        %v807 = vlaneseq
        %v808 = vshrl.u32 %v807, 7
        %v809 = vsub.s32 1, %v808
        %v810 = vrot.slane %v801, %v809
        %vm813 = vcmask 130048
        %v815 = vsel %vm813, %v387, 0
        %v818 = vsel %vm813, %v394, 0
        %v821 = vsel %vm813, %v401, 0
        %v824 = vsel %vm813, %v408, 0
        %v827 = vsel %vm813, %v415, 0
        %v830 = vsel %vm813, %v422, 0
        %v833 = vsel %vm813, %v429, 0
        %v836 = vsel %vm813, %v436, 0
        %v839 = vsel %vm813, %v443, 0
        %v842 = vsel %vm813, %v450, 0
        %v845 = vsel %vm813, %v457, 0
        %v848 = vsel %vm813, %v464, 0
        %v851 = vsel %vm813, %v471, 0
        %v854 = vsel %vm813, %v478, 0
        %v857 = vsel %vm813, %v485, 0
        %v860 = vsel %vm813, %v492, 0
        %v863 = vsel %vm813, %v499, 0
        %v866 = vsel %vm813, %v506, 0
        %v869 = vsel %vm813, %v513, 0
        %v872 = vsel %vm813, %v520, 0
        %v875 = vsel %vm813, %v527, 0
        %v878 = vsel %vm813, %v534, 0
        %v881 = vsel %vm813, %v541, 0
        %v884 = vsel %vm813, %v548, 0
        %v887 = vsel %vm813, %v555, 0
        %v890 = vsel %vm813, %v562, 0
        %v893 = vsel %vm813, %v569, 0
        %v896 = vsel %vm813, %v576, 0
        %v899 = vsel %vm813, %v583, 0
        %v902 = vsel %vm813, %v590, 0
        %v905 = vsel %vm813, %v597, 0
        %v908 = vsel %vm813, %v604, 0
        %910 = vmatprep.subr.mxu0 %v606
        %911 = vmatpush1.msra.mxu0 %v605
        %912 = vmatprep.subr.mxu0 %v608
        %913 = vmatpush1.msra.mxu0 %v607
        %914 = vmatprep.subr.mxu0 %v610
        %915 = vmatpush1.msra.mxu0 %v609
        %916 = vmatprep.subr.mxu0 %v612
        %917 = vmatpush1.msra.mxu0 %v611
        %918 = vmatprep.subr.mxu0 %v614
        %919 = vmatpush1.msra.mxu0 %v613
        %920 = vmatprep.subr.mxu0 %v616
        %921 = vmatpush1.msra.mxu0 %v615
        %922 = vmatprep.subr.mxu0 %v618
        %923 = vmatpush1.msra.mxu0 %v617
        %924 = vmatprep.subr.mxu0 %v620
        %925 = vmatpush1.msra.mxu0 %v619
        %926 = vmatprep.subr.mxu0 %v622
        %927 = vmatpush1.msra.mxu0 %v621
        %928 = vmatprep.subr.mxu0 %v624
        %929 = vmatpush1.msra.mxu0 %v623
        %930 = vmatprep.subr.mxu0 %v626
        %931 = vmatpush1.msra.mxu0 %v625
        %932 = vmatprep.subr.mxu0 %v628
        %933 = vmatpush1.msra.mxu0 %v627
        %934 = vmatprep.subr.mxu0 %v630
        %935 = vmatpush1.msra.mxu0 %v629
        %936 = vmatprep.subr.mxu0 %v632
        %937 = vmatpush1.msra.mxu0 %v631
        %938 = vmatprep.subr.mxu0 %v634
        %939 = vmatpush1.msra.mxu0 %v633
        %940 = vmatprep.subr.mxu0 %v636
        %941 = vmatpush1.msra.mxu0 %v635
        %942 = vmatprep.subr.mxu0 %v638
        %943 = vmatpush1.msra.mxu0 %v637
        %944 = vmatprep.subr.mxu0 %v640
        %945 = vmatpush1.msra.mxu0 %v639
        %946 = vmatprep.subr.mxu0 %v642
        %947 = vmatpush1.msra.mxu0 %v641
        %948 = vmatprep.subr.mxu0 %v644
        %949 = vmatpush1.msra.mxu0 %v643
        %950 = vmatprep.subr.mxu0 %v646
        %951 = vmatpush1.msra.mxu0 %v645
        %952 = vmatprep.subr.mxu0 %v648
        %953 = vmatpush1.msra.mxu0 %v647
        %954 = vmatprep.subr.mxu0 %v650
        %955 = vmatpush1.msra.mxu0 %v649
        %956 = vmatprep.subr.mxu0 %v652
        %957 = vmatpush1.msra.mxu0 %v651
        %958 = vmatprep.subr.mxu0 %v654
        %959 = vmatpush1.msra.mxu0 %v653
        %960 = vmatprep.subr.mxu0 %v656
        %961 = vmatpush1.msra.mxu0 %v655
        %962 = vmatprep.subr.mxu0 %v658
        %963 = vmatpush1.msra.mxu0 %v657
        %964 = vmatprep.subr.mxu0 %v660
        %965 = vmatpush1.msra.mxu0 %v659
        %966 = vmatprep.subr.mxu0 %v662
        %967 = vmatpush1.msra.mxu0 %v661
        %968 = vmatprep.subr.mxu0 %v664
        %969 = vmatpush1.msra.mxu0 %v663
        %970 = vmatprep.subr.mxu0 %v666
        %971 = vmatpush1.msra.mxu0 %v665
        %972 = vmatprep.subr.mxu0 %v668
        %973 = vmatpush1.msra.mxu0 %v667
        %974 = vmatprep.mubr.f32.mxu0 %v382
        %975 = vmatmul.mubr.f32.gmra.mrb[0].mxu0 %v381
        %v976 = vpop.f32.mrb[0].mxu0
        %v977 = vadd.f32 %v806, %v976
        %v978 = vpop.f32.mrb[0].mxu0
        %v979 = vadd.f32 %v810, %v978
        %980 = vmatprep.mubr.f32.mxu0 %v389
        %981 = vmatmul.mubr.f32.gmra.mrb[0].mxu0 %v388
        %v982 = vpop.f32.mrb[0].mxu0
        %v983 = vadd.f32 %v806, %v982
        %v984 = vpop.f32.mrb[0].mxu0
        %v985 = vadd.f32 %v810, %v984
        %986 = vmatprep.mubr.f32.mxu0 %v396
        %987 = vmatmul.mubr.f32.gmra.mrb[0].mxu0 %v395
        %v988 = vpop.f32.mrb[0].mxu0
        %v989 = vadd.f32 %v806, %v988
        %v990 = vpop.f32.mrb[0].mxu0
        %v991 = vadd.f32 %v810, %v990
        %992 = vmatprep.mubr.f32.mxu0 %v403
        %993 = vmatmul.mubr.f32.gmra.mrb[0].mxu0 %v402
        %v994 = vpop.f32.mrb[0].mxu0
        %v995 = vadd.f32 %v806, %v994
        %v996 = vpop.f32.mrb[0].mxu0
        %v997 = vadd.f32 %v810, %v996
        %998 = vmatprep.mubr.f32.mxu0 %v410
        %999 = vmatmul.mubr.f32.gmra.mrb[0].mxu0 %v409
        %v1000 = vpop.f32.mrb[0].mxu0
        %v1001 = vadd.f32 %v806, %v1000
        %v1002 = vpop.f32.mrb[0].mxu0
        %v1003 = vadd.f32 %v810, %v1002
        %1004 = vmatprep.mubr.f32.mxu0 %v417
        %1005 = vmatmul.mubr.f32.gmra.mrb[0].mxu0 %v416
        %v1006 = vpop.f32.mrb[0].mxu0
        %v1007 = vadd.f32 %v806, %v1006
        %v1008 = vpop.f32.mrb[0].mxu0
        %v1009 = vadd.f32 %v810, %v1008
        %1010 = vmatprep.mubr.f32.mxu0 %v424
        %1011 = vmatmul.mubr.f32.gmra.mrb[0].mxu0 %v423
        %v1012 = vpop.f32.mrb[0].mxu0
        %v1013 = vadd.f32 %v806, %v1012
        %v1014 = vpop.f32.mrb[0].mxu0
        %v1015 = vadd.f32 %v810, %v1014
        %1016 = vmatprep.mubr.f32.mxu0 %v431
        %1017 = vmatmul.mubr.f32.gmra.mrb[0].mxu0 %v430
        %v1018 = vpop.f32.mrb[0].mxu0
        %v1019 = vadd.f32 %v806, %v1018
        %v1020 = vpop.f32.mrb[0].mxu0
        %v1021 = vadd.f32 %v810, %v1020
        %1022 = vmatprep.mubr.f32.mxu0 %v438
        %1023 = vmatmul.mubr.f32.gmra.mrb[0].mxu0 %v437
        %v1024 = vpop.f32.mrb[0].mxu0
        %v1025 = vadd.f32 %v806, %v1024
        %v1026 = vpop.f32.mrb[0].mxu0
        %v1027 = vadd.f32 %v810, %v1026
        %1028 = vmatprep.mubr.f32.mxu0 %v445
        %1029 = vmatmul.mubr.f32.gmra.mrb[0].mxu0 %v444
        %v1030 = vpop.f32.mrb[0].mxu0
        %v1031 = vadd.f32 %v806, %v1030
        %v1032 = vpop.f32.mrb[0].mxu0
        %v1033 = vadd.f32 %v810, %v1032
        %1034 = vmatprep.mubr.f32.mxu0 %v452
        %1035 = vmatmul.mubr.f32.gmra.mrb[0].mxu0 %v451
        %v1036 = vpop.f32.mrb[0].mxu0
        %v1037 = vadd.f32 %v806, %v1036
        %v1038 = vpop.f32.mrb[0].mxu0
        %v1039 = vadd.f32 %v810, %v1038
        %1040 = vmatprep.mubr.f32.mxu0 %v459
        %1041 = vmatmul.mubr.f32.gmra.mrb[0].mxu0 %v458
        %v1042 = vpop.f32.mrb[0].mxu0
        %v1043 = vadd.f32 %v806, %v1042
        %v1044 = vpop.f32.mrb[0].mxu0
        %v1045 = vadd.f32 %v810, %v1044
        %1046 = vmatprep.mubr.f32.mxu0 %v466
        %1047 = vmatmul.mubr.f32.gmra.mrb[0].mxu0 %v465
        %v1048 = vpop.f32.mrb[0].mxu0
        %v1049 = vadd.f32 %v806, %v1048
        %v1050 = vpop.f32.mrb[0].mxu0
        %v1051 = vadd.f32 %v810, %v1050
        %1052 = vmatprep.mubr.f32.mxu0 %v473
        %1053 = vmatmul.mubr.f32.gmra.mrb[0].mxu0 %v472
        %v1054 = vpop.f32.mrb[0].mxu0
        %v1055 = vadd.f32 %v806, %v1054
        %v1056 = vpop.f32.mrb[0].mxu0
        %v1057 = vadd.f32 %v810, %v1056
        %1058 = vmatprep.mubr.f32.mxu0 %v480
        %1059 = vmatmul.mubr.f32.gmra.mrb[0].mxu0 %v479
        %v1060 = vpop.f32.mrb[0].mxu0
        %v1061 = vadd.f32 %v806, %v1060
        %v1062 = vpop.f32.mrb[0].mxu0
        %v1063 = vadd.f32 %v810, %v1062
        %1064 = vmatprep.mubr.f32.mxu0 %v487
        %1065 = vmatmul.mubr.f32.gmra.mrb[0].mxu0 %v486
        %v1066 = vpop.f32.mrb[0].mxu0
        %v1067 = vadd.f32 %v806, %v1066
        %v1068 = vpop.f32.mrb[0].mxu0
        %v1069 = vadd.f32 %v810, %v1068
        %1070 = vmatprep.mubr.f32.mxu0 %v494
        %1071 = vmatmul.mubr.f32.gmra.mrb[0].mxu0 %v493
        %v1072 = vpop.f32.mrb[0].mxu0
        %v1073 = vadd.f32 %v806, %v1072
        %v1074 = vpop.f32.mrb[0].mxu0
        %v1075 = vadd.f32 %v810, %v1074
        %1076 = vmatprep.mubr.f32.mxu0 %v501
        %1077 = vmatmul.mubr.f32.gmra.mrb[0].mxu0 %v500
        %v1078 = vpop.f32.mrb[0].mxu0
        %v1079 = vadd.f32 %v806, %v1078
        %v1080 = vpop.f32.mrb[0].mxu0
        %v1081 = vadd.f32 %v810, %v1080
        %1082 = vmatprep.mubr.f32.mxu0 %v508
        %1083 = vmatmul.mubr.f32.gmra.mrb[0].mxu0 %v507
        %v1084 = vpop.f32.mrb[0].mxu0
        %v1085 = vadd.f32 %v806, %v1084
        %v1086 = vpop.f32.mrb[0].mxu0
        %v1087 = vadd.f32 %v810, %v1086
        %1088 = vmatprep.mubr.f32.mxu0 %v515
        %1089 = vmatmul.mubr.f32.gmra.mrb[0].mxu0 %v514
        %v1090 = vpop.f32.mrb[0].mxu0
        %v1091 = vadd.f32 %v806, %v1090
        %v1092 = vpop.f32.mrb[0].mxu0
        %v1093 = vadd.f32 %v810, %v1092
        %1094 = vmatprep.mubr.f32.mxu0 %v522
        %1095 = vmatmul.mubr.f32.gmra.mrb[0].mxu0 %v521
        %v1096 = vpop.f32.mrb[0].mxu0
        %v1097 = vadd.f32 %v806, %v1096
        %v1098 = vpop.f32.mrb[0].mxu0
        %v1099 = vadd.f32 %v810, %v1098
        %1100 = vmatprep.mubr.f32.mxu0 %v529
        %1101 = vmatmul.mubr.f32.gmra.mrb[0].mxu0 %v528
        %v1102 = vpop.f32.mrb[0].mxu0
        %v1103 = vadd.f32 %v806, %v1102
        %v1104 = vpop.f32.mrb[0].mxu0
        %v1105 = vadd.f32 %v810, %v1104
        %1106 = vmatprep.mubr.f32.mxu0 %v536
        %1107 = vmatmul.mubr.f32.gmra.mrb[0].mxu0 %v535
        %v1108 = vpop.f32.mrb[0].mxu0
        %v1109 = vadd.f32 %v806, %v1108
        %v1110 = vpop.f32.mrb[0].mxu0
        %v1111 = vadd.f32 %v810, %v1110
        %1112 = vmatprep.mubr.f32.mxu0 %v543
        %1113 = vmatmul.mubr.f32.gmra.mrb[0].mxu0 %v542
        %v1114 = vpop.f32.mrb[0].mxu0
        %v1115 = vadd.f32 %v806, %v1114
        %v1116 = vpop.f32.mrb[0].mxu0
        %v1117 = vadd.f32 %v810, %v1116
        %1118 = vmatprep.mubr.f32.mxu0 %v550
        %1119 = vmatmul.mubr.f32.gmra.mrb[0].mxu0 %v549
        %v1120 = vpop.f32.mrb[0].mxu0
        %v1121 = vadd.f32 %v806, %v1120
        %v1122 = vpop.f32.mrb[0].mxu0
        %v1123 = vadd.f32 %v810, %v1122
        %1124 = vmatprep.mubr.f32.mxu0 %v557
        %1125 = vmatmul.mubr.f32.gmra.mrb[0].mxu0 %v556
        %v1126 = vpop.f32.mrb[0].mxu0
        %v1127 = vadd.f32 %v806, %v1126
        %v1128 = vpop.f32.mrb[0].mxu0
        %v1129 = vadd.f32 %v810, %v1128
        %1130 = vmatprep.mubr.f32.mxu0 %v564
        %1131 = vmatmul.mubr.f32.gmra.mrb[0].mxu0 %v563
        %v1132 = vpop.f32.mrb[0].mxu0
        %v1133 = vadd.f32 %v806, %v1132
        %v1134 = vpop.f32.mrb[0].mxu0
        %v1135 = vadd.f32 %v810, %v1134
        %1136 = vmatprep.mubr.f32.mxu0 %v571
        %1137 = vmatmul.mubr.f32.gmra.mrb[0].mxu0 %v570
        %v1138 = vpop.f32.mrb[0].mxu0
        %v1139 = vadd.f32 %v806, %v1138
        %v1140 = vpop.f32.mrb[0].mxu0
        %v1141 = vadd.f32 %v810, %v1140
        %1142 = vmatprep.mubr.f32.mxu0 %v578
        %1143 = vmatmul.mubr.f32.gmra.mrb[0].mxu0 %v577
        %v1144 = vpop.f32.mrb[0].mxu0
        %v1145 = vadd.f32 %v806, %v1144
        %v1146 = vpop.f32.mrb[0].mxu0
        %v1147 = vadd.f32 %v810, %v1146
        %1148 = vmatprep.mubr.f32.mxu0 %v585
        %1149 = vmatmul.mubr.f32.gmra.mrb[0].mxu0 %v584
        %v1150 = vpop.f32.mrb[0].mxu0
        %v1151 = vadd.f32 %v806, %v1150
        %v1152 = vpop.f32.mrb[0].mxu0
        %v1153 = vadd.f32 %v810, %v1152
        %1154 = vmatprep.mubr.f32.mxu0 %v592
        %1155 = vmatmul.mubr.f32.gmra.mrb[0].mxu0 %v591
        %v1156 = vpop.f32.mrb[0].mxu0
        %v1157 = vadd.f32 %v806, %v1156
        %v1158 = vpop.f32.mrb[0].mxu0
        %v1159 = vadd.f32 %v810, %v1158
        %1160 = vmatprep.mubr.f32.mxu0 %v599
        %1161 = vmatmul.mubr.f32.gmra.mrb[0].mxu0 %v598
        %v1162 = vpop.f32.mrb[0].mxu0
        %v1163 = vadd.f32 %v806, %v1162
        %v1164 = vpop.f32.mrb[0].mxu0
        %v1165 = vadd.f32 %v810, %v1164
        %1166 = vdwg.mxu0
        %1167 = vmatprep.subr.mxu0 %v670
        %1168 = vmatpush1.msra.mxu0 %v669
        %1169 = vmatprep.subr.mxu0 %v672
        %1170 = vmatpush1.msra.mxu0 %v671
        %1171 = vmatprep.subr.mxu0 %v674
        %1172 = vmatpush1.msra.mxu0 %v673
        %1173 = vmatprep.subr.mxu0 %v676
        %1174 = vmatpush1.msra.mxu0 %v675
        %1175 = vmatprep.subr.mxu0 %v678
        %1176 = vmatpush1.msra.mxu0 %v677
        %1177 = vmatprep.subr.mxu0 %v680
        %1178 = vmatpush1.msra.mxu0 %v679
        %1179 = vmatprep.subr.mxu0 %v682
        %1180 = vmatpush1.msra.mxu0 %v681
        %1181 = vmatprep.subr.mxu0 %v684
        %1182 = vmatpush1.msra.mxu0 %v683
        %1183 = vmatprep.subr.mxu0 %v686
        %1184 = vmatpush1.msra.mxu0 %v685
        %1185 = vmatprep.subr.mxu0 %v688
        %1186 = vmatpush1.msra.mxu0 %v687
        %1187 = vmatprep.subr.mxu0 %v690
        %1188 = vmatpush1.msra.mxu0 %v689
        %1189 = vmatprep.subr.mxu0 %v692
        %1190 = vmatpush1.msra.mxu0 %v691
        %1191 = vmatprep.subr.mxu0 %v694
        %1192 = vmatpush1.msra.mxu0 %v693
        %1193 = vmatprep.subr.mxu0 %v696
        %1194 = vmatpush1.msra.mxu0 %v695
        %1195 = vmatprep.subr.mxu0 %v698
        %1196 = vmatpush1.msra.mxu0 %v697
        %1197 = vmatprep.subr.mxu0 %v700
        %1198 = vmatpush1.msra.mxu0 %v699
        %1199 = vmatprep.subr.mxu0 %v702
        %1200 = vmatpush1.msra.mxu0 %v701
        %1201 = vmatprep.subr.mxu0 %v704
        %1202 = vmatpush1.msra.mxu0 %v703
        %1203 = vmatprep.subr.mxu0 %v706
        %1204 = vmatpush1.msra.mxu0 %v705
        %1205 = vmatprep.subr.mxu0 %v708
        %1206 = vmatpush1.msra.mxu0 %v707
        %1207 = vmatprep.subr.mxu0 %v710
        %1208 = vmatpush1.msra.mxu0 %v709
        %1209 = vmatprep.subr.mxu0 %v712
        %1210 = vmatpush1.msra.mxu0 %v711
        %1211 = vmatprep.subr.mxu0 %v714
        %1212 = vmatpush1.msra.mxu0 %v713
        %1213 = vmatprep.subr.mxu0 %v716
        %1214 = vmatpush1.msra.mxu0 %v715
        %1215 = vmatprep.subr.mxu0 %v718
        %1216 = vmatpush1.msra.mxu0 %v717
        %1217 = vmatprep.subr.mxu0 %v720
        %1218 = vmatpush1.msra.mxu0 %v719
        %1219 = vmatprep.subr.mxu0 %v722
        %1220 = vmatpush1.msra.mxu0 %v721
        %1221 = vmatprep.subr.mxu0 %v724
        %1222 = vmatpush1.msra.mxu0 %v723
        %1223 = vmatprep.subr.mxu0 %v726
        %1224 = vmatpush1.msra.mxu0 %v725
        %1225 = vmatprep.subr.mxu0 %v728
        %1226 = vmatpush1.msra.mxu0 %v727
        %1227 = vmatprep.subr.mxu0 %v730
        %1228 = vmatpush1.msra.mxu0 %v729
        %1229 = vmatprep.subr.mxu0 %v732
        %1230 = vmatpush1.msra.mxu0 %v731
        %1231 = vmatprep.mubr.f32.mxu0 %v384
        %1232 = vmatmul.mubr.f32.gmra.mrb[0].mxu0 %v383
        %v1233 = vpop.f32.mrb[0].mxu0
        %v1234 = vadd.f32 %v977, %v1233
        %v1235 = vpop.f32.mrb[0].mxu0
        %v1236 = vadd.f32 %v979, %v1235
        %1237 = vmatprep.mubr.f32.mxu0 %v391
        %1238 = vmatmul.mubr.f32.gmra.mrb[0].mxu0 %v390
        %v1239 = vpop.f32.mrb[0].mxu0
        %v1240 = vadd.f32 %v983, %v1239
        %v1241 = vpop.f32.mrb[0].mxu0
        %v1242 = vadd.f32 %v985, %v1241
        %1243 = vmatprep.mubr.f32.mxu0 %v398
        %1244 = vmatmul.mubr.f32.gmra.mrb[0].mxu0 %v397
        %v1245 = vpop.f32.mrb[0].mxu0
        %v1246 = vadd.f32 %v989, %v1245
        %v1247 = vpop.f32.mrb[0].mxu0
        %v1248 = vadd.f32 %v991, %v1247
        %1249 = vmatprep.mubr.f32.mxu0 %v405
        %1250 = vmatmul.mubr.f32.gmra.mrb[0].mxu0 %v404
        %v1251 = vpop.f32.mrb[0].mxu0
        %v1252 = vadd.f32 %v995, %v1251
        %v1253 = vpop.f32.mrb[0].mxu0
        %v1254 = vadd.f32 %v997, %v1253
        %1255 = vmatprep.mubr.f32.mxu0 %v412
        %1256 = vmatmul.mubr.f32.gmra.mrb[0].mxu0 %v411
        %v1257 = vpop.f32.mrb[0].mxu0
        %v1258 = vadd.f32 %v1001, %v1257
        %v1259 = vpop.f32.mrb[0].mxu0
        %v1260 = vadd.f32 %v1003, %v1259
        %1261 = vmatprep.mubr.f32.mxu0 %v419
        %1262 = vmatmul.mubr.f32.gmra.mrb[0].mxu0 %v418
        %v1263 = vpop.f32.mrb[0].mxu0
        %v1264 = vadd.f32 %v1007, %v1263
        %v1265 = vpop.f32.mrb[0].mxu0
        %v1266 = vadd.f32 %v1009, %v1265
        %1267 = vmatprep.mubr.f32.mxu0 %v426
        %1268 = vmatmul.mubr.f32.gmra.mrb[0].mxu0 %v425
        %v1269 = vpop.f32.mrb[0].mxu0
        %v1270 = vadd.f32 %v1013, %v1269
        %v1271 = vpop.f32.mrb[0].mxu0
        %v1272 = vadd.f32 %v1015, %v1271
        %1273 = vmatprep.mubr.f32.mxu0 %v433
        %1274 = vmatmul.mubr.f32.gmra.mrb[0].mxu0 %v432
        %v1275 = vpop.f32.mrb[0].mxu0
        %v1276 = vadd.f32 %v1019, %v1275
        %v1277 = vpop.f32.mrb[0].mxu0
        %v1278 = vadd.f32 %v1021, %v1277
        %1279 = vmatprep.mubr.f32.mxu0 %v440
        %1280 = vmatmul.mubr.f32.gmra.mrb[0].mxu0 %v439
        %v1281 = vpop.f32.mrb[0].mxu0
        %v1282 = vadd.f32 %v1025, %v1281
        %v1283 = vpop.f32.mrb[0].mxu0
        %v1284 = vadd.f32 %v1027, %v1283
        %1285 = vmatprep.mubr.f32.mxu0 %v447
        %1286 = vmatmul.mubr.f32.gmra.mrb[0].mxu0 %v446
        %v1287 = vpop.f32.mrb[0].mxu0
        %v1288 = vadd.f32 %v1031, %v1287
        %v1289 = vpop.f32.mrb[0].mxu0
        %v1290 = vadd.f32 %v1033, %v1289
        %1291 = vmatprep.mubr.f32.mxu0 %v454
        %1292 = vmatmul.mubr.f32.gmra.mrb[0].mxu0 %v453
        %v1293 = vpop.f32.mrb[0].mxu0
        %v1294 = vadd.f32 %v1037, %v1293
        %v1295 = vpop.f32.mrb[0].mxu0
        %v1296 = vadd.f32 %v1039, %v1295
        %1297 = vmatprep.mubr.f32.mxu0 %v461
        %1298 = vmatmul.mubr.f32.gmra.mrb[0].mxu0 %v460
        %v1299 = vpop.f32.mrb[0].mxu0
        %v1300 = vadd.f32 %v1043, %v1299
        %v1301 = vpop.f32.mrb[0].mxu0
        %v1302 = vadd.f32 %v1045, %v1301
        %1303 = vmatprep.mubr.f32.mxu0 %v468
        %1304 = vmatmul.mubr.f32.gmra.mrb[0].mxu0 %v467
        %v1305 = vpop.f32.mrb[0].mxu0
        %v1306 = vadd.f32 %v1049, %v1305
        %v1307 = vpop.f32.mrb[0].mxu0
        %v1308 = vadd.f32 %v1051, %v1307
        %1309 = vmatprep.mubr.f32.mxu0 %v475
        %1310 = vmatmul.mubr.f32.gmra.mrb[0].mxu0 %v474
        %v1311 = vpop.f32.mrb[0].mxu0
        %v1312 = vadd.f32 %v1055, %v1311
        %v1313 = vpop.f32.mrb[0].mxu0
        %v1314 = vadd.f32 %v1057, %v1313
        %1315 = vmatprep.mubr.f32.mxu0 %v482
        %1316 = vmatmul.mubr.f32.gmra.mrb[0].mxu0 %v481
        %v1317 = vpop.f32.mrb[0].mxu0
        %v1318 = vadd.f32 %v1061, %v1317
        %v1319 = vpop.f32.mrb[0].mxu0
        %v1320 = vadd.f32 %v1063, %v1319
        %1321 = vmatprep.mubr.f32.mxu0 %v489
        %1322 = vmatmul.mubr.f32.gmra.mrb[0].mxu0 %v488
        %v1323 = vpop.f32.mrb[0].mxu0
        %v1324 = vadd.f32 %v1067, %v1323
        %v1325 = vpop.f32.mrb[0].mxu0
        %v1326 = vadd.f32 %v1069, %v1325
        %1327 = vmatprep.mubr.f32.mxu0 %v496
        %1328 = vmatmul.mubr.f32.gmra.mrb[0].mxu0 %v495
        %v1329 = vpop.f32.mrb[0].mxu0
        %v1330 = vadd.f32 %v1073, %v1329
        %v1331 = vpop.f32.mrb[0].mxu0
        %v1332 = vadd.f32 %v1075, %v1331
        %1333 = vmatprep.mubr.f32.mxu0 %v503
        %1334 = vmatmul.mubr.f32.gmra.mrb[0].mxu0 %v502
        %v1335 = vpop.f32.mrb[0].mxu0
        %v1336 = vadd.f32 %v1079, %v1335
        %v1337 = vpop.f32.mrb[0].mxu0
        %v1338 = vadd.f32 %v1081, %v1337
        %1339 = vmatprep.mubr.f32.mxu0 %v510
        %1340 = vmatmul.mubr.f32.gmra.mrb[0].mxu0 %v509
        %v1341 = vpop.f32.mrb[0].mxu0
        %v1342 = vadd.f32 %v1085, %v1341
        %v1343 = vpop.f32.mrb[0].mxu0
        %v1344 = vadd.f32 %v1087, %v1343
        %1345 = vmatprep.mubr.f32.mxu0 %v517
        %1346 = vmatmul.mubr.f32.gmra.mrb[0].mxu0 %v516
        %v1347 = vpop.f32.mrb[0].mxu0
        %v1348 = vadd.f32 %v1091, %v1347
        %v1349 = vpop.f32.mrb[0].mxu0
        %v1350 = vadd.f32 %v1093, %v1349
        %1351 = vmatprep.mubr.f32.mxu0 %v524
        %1352 = vmatmul.mubr.f32.gmra.mrb[0].mxu0 %v523
        %v1353 = vpop.f32.mrb[0].mxu0
        %v1354 = vadd.f32 %v1097, %v1353
        %v1355 = vpop.f32.mrb[0].mxu0
        %v1356 = vadd.f32 %v1099, %v1355
        %1357 = vmatprep.mubr.f32.mxu0 %v531
        %1358 = vmatmul.mubr.f32.gmra.mrb[0].mxu0 %v530
        %v1359 = vpop.f32.mrb[0].mxu0
        %v1360 = vadd.f32 %v1103, %v1359
        %v1361 = vpop.f32.mrb[0].mxu0
        %v1362 = vadd.f32 %v1105, %v1361
        %1363 = vmatprep.mubr.f32.mxu0 %v538
        %1364 = vmatmul.mubr.f32.gmra.mrb[0].mxu0 %v537
        %v1365 = vpop.f32.mrb[0].mxu0
        %v1366 = vadd.f32 %v1109, %v1365
        %v1367 = vpop.f32.mrb[0].mxu0
        %v1368 = vadd.f32 %v1111, %v1367
        %1369 = vmatprep.mubr.f32.mxu0 %v545
        %1370 = vmatmul.mubr.f32.gmra.mrb[0].mxu0 %v544
        %v1371 = vpop.f32.mrb[0].mxu0
        %v1372 = vadd.f32 %v1115, %v1371
        %v1373 = vpop.f32.mrb[0].mxu0
        %v1374 = vadd.f32 %v1117, %v1373
        %1375 = vmatprep.mubr.f32.mxu0 %v552
        %1376 = vmatmul.mubr.f32.gmra.mrb[0].mxu0 %v551
        %v1377 = vpop.f32.mrb[0].mxu0
        %v1378 = vadd.f32 %v1121, %v1377
        %v1379 = vpop.f32.mrb[0].mxu0
        %v1380 = vadd.f32 %v1123, %v1379
        %1381 = vmatprep.mubr.f32.mxu0 %v559
        %1382 = vmatmul.mubr.f32.gmra.mrb[0].mxu0 %v558
        %v1383 = vpop.f32.mrb[0].mxu0
        %v1384 = vadd.f32 %v1127, %v1383
        %v1385 = vpop.f32.mrb[0].mxu0
        %v1386 = vadd.f32 %v1129, %v1385
        %1387 = vmatprep.mubr.f32.mxu0 %v566
        %1388 = vmatmul.mubr.f32.gmra.mrb[0].mxu0 %v565
        %v1389 = vpop.f32.mrb[0].mxu0
        %v1390 = vadd.f32 %v1133, %v1389
        %v1391 = vpop.f32.mrb[0].mxu0
        %v1392 = vadd.f32 %v1135, %v1391
        %1393 = vmatprep.mubr.f32.mxu0 %v573
        %1394 = vmatmul.mubr.f32.gmra.mrb[0].mxu0 %v572
        %v1395 = vpop.f32.mrb[0].mxu0
        %v1396 = vadd.f32 %v1139, %v1395
        %v1397 = vpop.f32.mrb[0].mxu0
        %v1398 = vadd.f32 %v1141, %v1397
        %1399 = vmatprep.mubr.f32.mxu0 %v580
        %1400 = vmatmul.mubr.f32.gmra.mrb[0].mxu0 %v579
        %v1401 = vpop.f32.mrb[0].mxu0
        %v1402 = vadd.f32 %v1145, %v1401
        %v1403 = vpop.f32.mrb[0].mxu0
        %v1404 = vadd.f32 %v1147, %v1403
        %1405 = vmatprep.mubr.f32.mxu0 %v587
        %1406 = vmatmul.mubr.f32.gmra.mrb[0].mxu0 %v586
        %v1407 = vpop.f32.mrb[0].mxu0
        %v1408 = vadd.f32 %v1151, %v1407
        %v1409 = vpop.f32.mrb[0].mxu0
        %v1410 = vadd.f32 %v1153, %v1409
        %1411 = vmatprep.mubr.f32.mxu0 %v594
        %1412 = vmatmul.mubr.f32.gmra.mrb[0].mxu0 %v593
        %v1413 = vpop.f32.mrb[0].mxu0
        %v1414 = vadd.f32 %v1157, %v1413
        %v1415 = vpop.f32.mrb[0].mxu0
        %v1416 = vadd.f32 %v1159, %v1415
        %1417 = vmatprep.mubr.f32.mxu0 %v601
        %1418 = vmatmul.mubr.f32.gmra.mrb[0].mxu0 %v600
        %v1419 = vpop.f32.mrb[0].mxu0
        %v1420 = vadd.f32 %v1163, %v1419
        %v1421 = vpop.f32.mrb[0].mxu0
        %v1422 = vadd.f32 %v1165, %v1421
        %1423 = vdwg.mxu0
        %1424 = vmatprep.subr.mxu0 %v734
        %1425 = vmatpush1.msra.mxu0 %v733
        %1426 = vmatprep.subr.mxu0 %v736
        %1427 = vmatpush1.msra.mxu0 %v735
        %1428 = vmatprep.subr.mxu0 %v738
        %1429 = vmatpush1.msra.mxu0 %v737
        %1430 = vmatprep.subr.mxu0 %v740
        %1431 = vmatpush1.msra.mxu0 %v739
        %1432 = vmatprep.subr.mxu0 %v742
        %1433 = vmatpush1.msra.mxu0 %v741
        %1434 = vmatprep.subr.mxu0 %v744
        %1435 = vmatpush1.msra.mxu0 %v743
        %1436 = vmatprep.subr.mxu0 %v746
        %1437 = vmatpush1.msra.mxu0 %v745
        %1438 = vmatprep.subr.mxu0 %v748
        %1439 = vmatpush1.msra.mxu0 %v747
        %1440 = vmatprep.subr.mxu0 %v750
        %1441 = vmatpush1.msra.mxu0 %v749
        %1442 = vmatprep.subr.mxu0 %v752
        %1443 = vmatpush1.msra.mxu0 %v751
        %1444 = vmatprep.subr.mxu0 %v754
        %1445 = vmatpush1.msra.mxu0 %v753
        %1446 = vmatprep.subr.mxu0 %v756
        %1447 = vmatpush1.msra.mxu0 %v755
        %1448 = vmatprep.subr.mxu0 %v758
        %1449 = vmatpush1.msra.mxu0 %v757
        %1450 = vmatprep.subr.mxu0 %v760
        %1451 = vmatpush1.msra.mxu0 %v759
        %1452 = vmatprep.subr.mxu0 %v762
        %1453 = vmatpush1.msra.mxu0 %v761
        %1454 = vmatprep.subr.mxu0 %v764
        %1455 = vmatpush1.msra.mxu0 %v763
        %1456 = vmatprep.subr.mxu0 %v766
        %1457 = vmatpush1.msra.mxu0 %v765
        %1458 = vmatprep.subr.mxu0 %v768
        %1459 = vmatpush1.msra.mxu0 %v767
        %1460 = vmatprep.subr.mxu0 %v770
        %1461 = vmatpush1.msra.mxu0 %v769
        %1462 = vmatprep.subr.mxu0 %v772
        %1463 = vmatpush1.msra.mxu0 %v771
        %1464 = vmatprep.subr.mxu0 %v774
        %1465 = vmatpush1.msra.mxu0 %v773
        %1466 = vmatprep.subr.mxu0 %v776
        %1467 = vmatpush1.msra.mxu0 %v775
        %1468 = vmatprep.subr.mxu0 %v778
        %1469 = vmatpush1.msra.mxu0 %v777
        %1470 = vmatprep.subr.mxu0 %v780
        %1471 = vmatpush1.msra.mxu0 %v779
        %1472 = vmatprep.subr.mxu0 %v782
        %1473 = vmatpush1.msra.mxu0 %v781
        %1474 = vmatprep.subr.mxu0 %v784
        %1475 = vmatpush1.msra.mxu0 %v783
        %1476 = vmatprep.subr.mxu0 %v786
        %1477 = vmatpush1.msra.mxu0 %v785
        %1478 = vmatprep.subr.mxu0 %v788
        %1479 = vmatpush1.msra.mxu0 %v787
        %1480 = vmatprep.subr.mxu0 %v790
        %1481 = vmatpush1.msra.mxu0 %v789
        %1482 = vmatprep.subr.mxu0 %v792
        %1483 = vmatpush1.msra.mxu0 %v791
        %1484 = vmatprep.subr.mxu0 %v794
        %1485 = vmatpush1.msra.mxu0 %v793
        %1486 = vmatprep.subr.mxu0 %v796
        %1487 = vmatpush1.msra.mxu0 %v795
        %1488 = vmatprep.mubr.f32.mxu0 %v386
        %1489 = vmatmul.mubr.f32.gmra.mrb[0].mxu0 %v385
        %v1490 = vpop.f32.mrb[0].mxu0
        %v1491 = vadd.f32 %v1234, %v1490
        %v1492 = vpop.f32.mrb[0].mxu0
        %v1493 = vadd.f32 %v1236, %v1492
        %1494 = vmatprep.mubr.f32.mxu0 %v393
        %1495 = vmatmul.mubr.f32.gmra.mrb[0].mxu0 %v392
        %v1496 = vpop.f32.mrb[0].mxu0
        %v1497 = vadd.f32 %v1240, %v1496
        %v1498 = vpop.f32.mrb[0].mxu0
        %v1499 = vadd.f32 %v1242, %v1498
        %1500 = vmatprep.mubr.f32.mxu0 %v400
        %1501 = vmatmul.mubr.f32.gmra.mrb[0].mxu0 %v399
        %v1502 = vpop.f32.mrb[0].mxu0
        %v1503 = vadd.f32 %v1246, %v1502
        %v1504 = vpop.f32.mrb[0].mxu0
        %v1505 = vadd.f32 %v1248, %v1504
        %1506 = vmatprep.mubr.f32.mxu0 %v407
        %1507 = vmatmul.mubr.f32.gmra.mrb[0].mxu0 %v406
        %v1508 = vpop.f32.mrb[0].mxu0
        %v1509 = vadd.f32 %v1252, %v1508
        %v1510 = vpop.f32.mrb[0].mxu0
        %v1511 = vadd.f32 %v1254, %v1510
        %1512 = vmatprep.mubr.f32.mxu0 %v414
        %1513 = vmatmul.mubr.f32.gmra.mrb[0].mxu0 %v413
        %v1514 = vpop.f32.mrb[0].mxu0
        %v1515 = vadd.f32 %v1258, %v1514
        %v1516 = vpop.f32.mrb[0].mxu0
        %v1517 = vadd.f32 %v1260, %v1516
        %1518 = vmatprep.mubr.f32.mxu0 %v421
        %1519 = vmatmul.mubr.f32.gmra.mrb[0].mxu0 %v420
        %v1520 = vpop.f32.mrb[0].mxu0
        %v1521 = vadd.f32 %v1264, %v1520
        %v1522 = vpop.f32.mrb[0].mxu0
        %v1523 = vadd.f32 %v1266, %v1522
        %1524 = vmatprep.mubr.f32.mxu0 %v428
        %1525 = vmatmul.mubr.f32.gmra.mrb[0].mxu0 %v427
        %v1526 = vpop.f32.mrb[0].mxu0
        %v1527 = vadd.f32 %v1270, %v1526
        %v1528 = vpop.f32.mrb[0].mxu0
        %v1529 = vadd.f32 %v1272, %v1528
        %1530 = vmatprep.mubr.f32.mxu0 %v435
        %1531 = vmatmul.mubr.f32.gmra.mrb[0].mxu0 %v434
        %v1532 = vpop.f32.mrb[0].mxu0
        %v1533 = vadd.f32 %v1276, %v1532
        %v1534 = vpop.f32.mrb[0].mxu0
        %v1535 = vadd.f32 %v1278, %v1534
        %1536 = vmatprep.mubr.f32.mxu0 %v442
        %1537 = vmatmul.mubr.f32.gmra.mrb[0].mxu0 %v441
        %v1538 = vpop.f32.mrb[0].mxu0
        %v1539 = vadd.f32 %v1282, %v1538
        %v1540 = vpop.f32.mrb[0].mxu0
        %v1541 = vadd.f32 %v1284, %v1540
        %1542 = vmatprep.mubr.f32.mxu0 %v449
        %1543 = vmatmul.mubr.f32.gmra.mrb[0].mxu0 %v448
        %v1544 = vpop.f32.mrb[0].mxu0
        %v1545 = vadd.f32 %v1288, %v1544
        %v1546 = vpop.f32.mrb[0].mxu0
        %v1547 = vadd.f32 %v1290, %v1546
        %1548 = vmatprep.mubr.f32.mxu0 %v456
        %1549 = vmatmul.mubr.f32.gmra.mrb[0].mxu0 %v455
        %v1550 = vpop.f32.mrb[0].mxu0
        %v1551 = vadd.f32 %v1294, %v1550
        %v1552 = vpop.f32.mrb[0].mxu0
        %v1553 = vadd.f32 %v1296, %v1552
        %1554 = vmatprep.mubr.f32.mxu0 %v463
        %1555 = vmatmul.mubr.f32.gmra.mrb[0].mxu0 %v462
        %v1556 = vpop.f32.mrb[0].mxu0
        %v1557 = vadd.f32 %v1300, %v1556
        %v1558 = vpop.f32.mrb[0].mxu0
        %v1559 = vadd.f32 %v1302, %v1558
        %1560 = vmatprep.mubr.f32.mxu0 %v470
        %1561 = vmatmul.mubr.f32.gmra.mrb[0].mxu0 %v469
        %v1562 = vpop.f32.mrb[0].mxu0
        %v1563 = vadd.f32 %v1306, %v1562
        %v1564 = vpop.f32.mrb[0].mxu0
        %v1565 = vadd.f32 %v1308, %v1564
        %1566 = vmatprep.mubr.f32.mxu0 %v477
        %1567 = vmatmul.mubr.f32.gmra.mrb[0].mxu0 %v476
        %v1568 = vpop.f32.mrb[0].mxu0
        %v1569 = vadd.f32 %v1312, %v1568
        %v1570 = vpop.f32.mrb[0].mxu0
        %v1571 = vadd.f32 %v1314, %v1570
        %1572 = vmatprep.mubr.f32.mxu0 %v484
        %1573 = vmatmul.mubr.f32.gmra.mrb[0].mxu0 %v483
        %v1574 = vpop.f32.mrb[0].mxu0
        %v1575 = vadd.f32 %v1318, %v1574
        %v1576 = vpop.f32.mrb[0].mxu0
        %v1577 = vadd.f32 %v1320, %v1576
        %1578 = vmatprep.mubr.f32.mxu0 %v491
        %1579 = vmatmul.mubr.f32.gmra.mrb[0].mxu0 %v490
        %v1580 = vpop.f32.mrb[0].mxu0
        %v1581 = vadd.f32 %v1324, %v1580
        %v1582 = vpop.f32.mrb[0].mxu0
        %v1583 = vadd.f32 %v1326, %v1582
        %1584 = vmatprep.mubr.f32.mxu0 %v498
        %1585 = vmatmul.mubr.f32.gmra.mrb[0].mxu0 %v497
        %v1586 = vpop.f32.mrb[0].mxu0
        %v1587 = vadd.f32 %v1330, %v1586
        %v1588 = vpop.f32.mrb[0].mxu0
        %v1589 = vadd.f32 %v1332, %v1588
        %1590 = vmatprep.mubr.f32.mxu0 %v505
        %1591 = vmatmul.mubr.f32.gmra.mrb[0].mxu0 %v504
        %v1592 = vpop.f32.mrb[0].mxu0
        %v1593 = vadd.f32 %v1336, %v1592
        %v1594 = vpop.f32.mrb[0].mxu0
        %v1595 = vadd.f32 %v1338, %v1594
        %1596 = vmatprep.mubr.f32.mxu0 %v512
        %1597 = vmatmul.mubr.f32.gmra.mrb[0].mxu0 %v511
        %v1598 = vpop.f32.mrb[0].mxu0
        %v1599 = vadd.f32 %v1342, %v1598
        %v1600 = vpop.f32.mrb[0].mxu0
        %v1601 = vadd.f32 %v1344, %v1600
        %1602 = vmatprep.mubr.f32.mxu0 %v519
        %1603 = vmatmul.mubr.f32.gmra.mrb[0].mxu0 %v518
        %v1604 = vpop.f32.mrb[0].mxu0
        %v1605 = vadd.f32 %v1348, %v1604
        %v1606 = vpop.f32.mrb[0].mxu0
        %v1607 = vadd.f32 %v1350, %v1606
        %1608 = vmatprep.mubr.f32.mxu0 %v526
        %1609 = vmatmul.mubr.f32.gmra.mrb[0].mxu0 %v525
        %v1610 = vpop.f32.mrb[0].mxu0
        %v1611 = vadd.f32 %v1354, %v1610
        %v1612 = vpop.f32.mrb[0].mxu0
        %v1613 = vadd.f32 %v1356, %v1612
        %1614 = vmatprep.mubr.f32.mxu0 %v533
        %1615 = vmatmul.mubr.f32.gmra.mrb[0].mxu0 %v532
        %v1616 = vpop.f32.mrb[0].mxu0
        %v1617 = vadd.f32 %v1360, %v1616
        %v1618 = vpop.f32.mrb[0].mxu0
        %v1619 = vadd.f32 %v1362, %v1618
        %1620 = vmatprep.mubr.f32.mxu0 %v540
        %1621 = vmatmul.mubr.f32.gmra.mrb[0].mxu0 %v539
        %v1622 = vpop.f32.mrb[0].mxu0
        %v1623 = vadd.f32 %v1366, %v1622
        %v1624 = vpop.f32.mrb[0].mxu0
        %v1625 = vadd.f32 %v1368, %v1624
        %1626 = vmatprep.mubr.f32.mxu0 %v547
        %1627 = vmatmul.mubr.f32.gmra.mrb[0].mxu0 %v546
        %v1628 = vpop.f32.mrb[0].mxu0
        %v1629 = vadd.f32 %v1372, %v1628
        %v1630 = vpop.f32.mrb[0].mxu0
        %v1631 = vadd.f32 %v1374, %v1630
        %1632 = vmatprep.mubr.f32.mxu0 %v554
        %1633 = vmatmul.mubr.f32.gmra.mrb[0].mxu0 %v553
        %v1634 = vpop.f32.mrb[0].mxu0
        %v1635 = vadd.f32 %v1378, %v1634
        %v1636 = vpop.f32.mrb[0].mxu0
        %v1637 = vadd.f32 %v1380, %v1636
        %1638 = vmatprep.mubr.f32.mxu0 %v561
        %1639 = vmatmul.mubr.f32.gmra.mrb[0].mxu0 %v560
        %v1640 = vpop.f32.mrb[0].mxu0
        %v1641 = vadd.f32 %v1384, %v1640
        %v1642 = vpop.f32.mrb[0].mxu0
        %v1643 = vadd.f32 %v1386, %v1642
        %1644 = vmatprep.mubr.f32.mxu0 %v568
        %1645 = vmatmul.mubr.f32.gmra.mrb[0].mxu0 %v567
        %v1646 = vpop.f32.mrb[0].mxu0
        %v1647 = vadd.f32 %v1390, %v1646
        %v1648 = vpop.f32.mrb[0].mxu0
        %v1649 = vadd.f32 %v1392, %v1648
        %1650 = vmatprep.mubr.f32.mxu0 %v575
        %1651 = vmatmul.mubr.f32.gmra.mrb[0].mxu0 %v574
        %v1652 = vpop.f32.mrb[0].mxu0
        %v1653 = vadd.f32 %v1396, %v1652
        %v1654 = vpop.f32.mrb[0].mxu0
        %v1655 = vadd.f32 %v1398, %v1654
        %1656 = vmatprep.mubr.f32.mxu0 %v582
        %1657 = vmatmul.mubr.f32.gmra.mrb[0].mxu0 %v581
        %v1658 = vpop.f32.mrb[0].mxu0
        %v1659 = vadd.f32 %v1402, %v1658
        %v1660 = vpop.f32.mrb[0].mxu0
        %v1661 = vadd.f32 %v1404, %v1660
        %1662 = vmatprep.mubr.f32.mxu0 %v589
        %1663 = vmatmul.mubr.f32.gmra.mrb[0].mxu0 %v588
        %v1664 = vpop.f32.mrb[0].mxu0
        %v1665 = vadd.f32 %v1408, %v1664
        %v1666 = vpop.f32.mrb[0].mxu0
        %v1667 = vadd.f32 %v1410, %v1666
        %1668 = vmatprep.mubr.f32.mxu0 %v596
        %1669 = vmatmul.mubr.f32.gmra.mrb[0].mxu0 %v595
        %v1670 = vpop.f32.mrb[0].mxu0
        %v1671 = vadd.f32 %v1414, %v1670
        %v1672 = vpop.f32.mrb[0].mxu0
        %v1673 = vadd.f32 %v1416, %v1672
        %1674 = vmatprep.mubr.f32.mxu0 %v603
        %1675 = vmatmul.mubr.f32.gmra.mrb[0].mxu0 %v602
        %v1676 = vpop.f32.mrb[0].mxu0
        %v1677 = vadd.f32 %v1420, %v1676
        %v1678 = vpop.f32.mrb[0].mxu0
        %v1679 = vadd.f32 %v1422, %v1678
        %1680 = vdwg.mxu0
        %1681 = vmatprep.subr.mxu0 %v798
        %1682 = vmatpush1.msra.mxu0 %v797
        %1683 = vmatprep.subr.mxu0 %v800
        %1684 = vmatpush1.msra.mxu0 %v799
        %1685 = vmatprep.subr.mxu0 0.0
        %1686 = vmatpush1.msra.mxu0 0.0
        %1687 = vmatprep.subr.mxu0 0.0
        %1688 = vmatpush1.msra.mxu0 0.0
        %1689 = vmatprep.subr.mxu0 0.0
        %1690 = vmatpush1.msra.mxu0 0.0
        %1691 = vmatprep.subr.mxu0 0.0
        %1692 = vmatpush1.msra.mxu0 0.0
        %1693 = vmatprep.subr.mxu0 0.0
        %1694 = vmatpush1.msra.mxu0 0.0
        %1695 = vmatprep.subr.mxu0 0.0
        %1696 = vmatpush1.msra.mxu0 0.0
        %1697 = vmatprep.subr.mxu0 0.0
        %1698 = vmatpush1.msra.mxu0 0.0
        %1699 = vmatprep.subr.mxu0 0.0
        %1700 = vmatpush1.msra.mxu0 0.0
        %1701 = vmatprep.subr.mxu0 0.0
        %1702 = vmatpush1.msra.mxu0 0.0
        %1703 = vmatprep.subr.mxu0 0.0
        %1704 = vmatpush1.msra.mxu0 0.0
        %1705 = vmatprep.subr.mxu0 0.0
        %1706 = vmatpush1.msra.mxu0 0.0
        %1707 = vmatprep.subr.mxu0 0.0
        %1708 = vmatpush1.msra.mxu0 0.0
        %1709 = vmatprep.subr.mxu0 0.0
        %1710 = vmatpush1.msra.mxu0 0.0
        %1711 = vmatprep.subr.mxu0 0.0
        %1712 = vmatpush1.msra.mxu0 0.0
        %1713 = vmatprep.subr.mxu0 0.0
        %1714 = vmatpush1.msra.mxu0 0.0
        %1715 = vmatprep.subr.mxu0 0.0
        %1716 = vmatpush1.msra.mxu0 0.0
        %1717 = vmatprep.subr.mxu0 0.0
        %1718 = vmatpush1.msra.mxu0 0.0
        %1719 = vmatprep.subr.mxu0 0.0
        %1720 = vmatpush1.msra.mxu0 0.0
        %1721 = vmatprep.subr.mxu0 0.0
        %1722 = vmatpush1.msra.mxu0 0.0
        %1723 = vmatprep.subr.mxu0 0.0
        %1724 = vmatpush1.msra.mxu0 0.0
        %1725 = vmatprep.subr.mxu0 0.0
        %1726 = vmatpush1.msra.mxu0 0.0
        %1727 = vmatprep.subr.mxu0 0.0
        %1728 = vmatpush1.msra.mxu0 0.0
        %1729 = vmatprep.subr.mxu0 0.0
        %1730 = vmatpush1.msra.mxu0 0.0
        %1731 = vmatprep.subr.mxu0 0.0
        %1732 = vmatpush1.msra.mxu0 0.0
        %1733 = vmatprep.subr.mxu0 0.0
        %1734 = vmatpush1.msra.mxu0 0.0
        %1735 = vmatprep.subr.mxu0 0.0
        %1736 = vmatpush1.msra.mxu0 0.0
        %1737 = vmatprep.subr.mxu0 0.0
        %1738 = vmatpush1.msra.mxu0 0.0
        %1739 = vmatprep.subr.mxu0 0.0
        %1740 = vmatpush1.msra.mxu0 0.0
        %1741 = vmatprep.subr.mxu0 0.0
        %1742 = vmatpush1.msra.mxu0 0.0
        %1743 = vmatprep.subr.mxu0 0.0
        %1744 = vmatpush1.msra.mxu0 0.0
        %1745 = vmatprep.mubr.f32.mxu0 0.0
        %1746 = vmatmul.mubr.f32.gmra.mrb[0].mxu0 %v815
        %v1747 = vpop.f32.mrb[0].mxu0
        %v1748 = vadd.f32 %v1491, %v1747
        %v1749 = vpop.f32.mrb[0].mxu0
        %v1750 = vadd.f32 %v1493, %v1749
        %1751 = vmatprep.mubr.f32.mxu0 0.0
        %1752 = vmatmul.mubr.f32.gmra.mrb[0].mxu0 %v818
        %v1753 = vpop.f32.mrb[0].mxu0
        %v1754 = vadd.f32 %v1497, %v1753
        %v1755 = vpop.f32.mrb[0].mxu0
        %v1756 = vadd.f32 %v1499, %v1755
        %1757 = vmatprep.mubr.f32.mxu0 0.0
        %1758 = vmatmul.mubr.f32.gmra.mrb[0].mxu0 %v821
        %v1759 = vpop.f32.mrb[0].mxu0
        %v1760 = vadd.f32 %v1503, %v1759
        %v1761 = vpop.f32.mrb[0].mxu0
        %v1762 = vadd.f32 %v1505, %v1761
        %1763 = vmatprep.mubr.f32.mxu0 0.0
        %1764 = vmatmul.mubr.f32.gmra.mrb[0].mxu0 %v824
        %v1765 = vpop.f32.mrb[0].mxu0
        %v1766 = vadd.f32 %v1509, %v1765
        %v1767 = vpop.f32.mrb[0].mxu0
        %v1768 = vadd.f32 %v1511, %v1767
        %1769 = vmatprep.mubr.f32.mxu0 0.0
        %1770 = vmatmul.mubr.f32.gmra.mrb[0].mxu0 %v827
        %v1771 = vpop.f32.mrb[0].mxu0
        %v1772 = vadd.f32 %v1515, %v1771
        %v1773 = vpop.f32.mrb[0].mxu0
        %v1774 = vadd.f32 %v1517, %v1773
        %1775 = vmatprep.mubr.f32.mxu0 0.0
        %1776 = vmatmul.mubr.f32.gmra.mrb[0].mxu0 %v830
        %v1777 = vpop.f32.mrb[0].mxu0
        %v1778 = vadd.f32 %v1521, %v1777
        %v1779 = vpop.f32.mrb[0].mxu0
        %v1780 = vadd.f32 %v1523, %v1779
        %1781 = vmatprep.mubr.f32.mxu0 0.0
        %1782 = vmatmul.mubr.f32.gmra.mrb[0].mxu0 %v833
        %v1783 = vpop.f32.mrb[0].mxu0
        %v1784 = vadd.f32 %v1527, %v1783
        %v1785 = vpop.f32.mrb[0].mxu0
        %v1786 = vadd.f32 %v1529, %v1785
        %1787 = vmatprep.mubr.f32.mxu0 0.0
        %1788 = vmatmul.mubr.f32.gmra.mrb[0].mxu0 %v836
        %v1789 = vpop.f32.mrb[0].mxu0
        %v1790 = vadd.f32 %v1533, %v1789
        %v1791 = vpop.f32.mrb[0].mxu0
        %v1792 = vadd.f32 %v1535, %v1791
        %1793 = vmatprep.mubr.f32.mxu0 0.0
        %1794 = vmatmul.mubr.f32.gmra.mrb[0].mxu0 %v839
        %v1795 = vpop.f32.mrb[0].mxu0
        %v1796 = vadd.f32 %v1539, %v1795
        %v1797 = vpop.f32.mrb[0].mxu0
        %v1798 = vadd.f32 %v1541, %v1797
        %1799 = vmatprep.mubr.f32.mxu0 0.0
        %1800 = vmatmul.mubr.f32.gmra.mrb[0].mxu0 %v842
        %v1801 = vpop.f32.mrb[0].mxu0
        %v1802 = vadd.f32 %v1545, %v1801
        %v1803 = vpop.f32.mrb[0].mxu0
        %v1804 = vadd.f32 %v1547, %v1803
        %1805 = vmatprep.mubr.f32.mxu0 0.0
        %1806 = vmatmul.mubr.f32.gmra.mrb[0].mxu0 %v845
        %v1807 = vpop.f32.mrb[0].mxu0
        %v1808 = vadd.f32 %v1551, %v1807
        %v1809 = vpop.f32.mrb[0].mxu0
        %v1810 = vadd.f32 %v1553, %v1809
        %1811 = vmatprep.mubr.f32.mxu0 0.0
        %1812 = vmatmul.mubr.f32.gmra.mrb[0].mxu0 %v848
        %v1813 = vpop.f32.mrb[0].mxu0
        %v1814 = vadd.f32 %v1557, %v1813
        %v1815 = vpop.f32.mrb[0].mxu0
        %v1816 = vadd.f32 %v1559, %v1815
        %1817 = vmatprep.mubr.f32.mxu0 0.0
        %1818 = vmatmul.mubr.f32.gmra.mrb[0].mxu0 %v851
        %v1819 = vpop.f32.mrb[0].mxu0
        %v1820 = vadd.f32 %v1563, %v1819
        %v1821 = vpop.f32.mrb[0].mxu0
        %v1822 = vadd.f32 %v1565, %v1821
        %1823 = vmatprep.mubr.f32.mxu0 0.0
        %1824 = vmatmul.mubr.f32.gmra.mrb[0].mxu0 %v854
        %v1825 = vpop.f32.mrb[0].mxu0
        %v1826 = vadd.f32 %v1569, %v1825
        %v1827 = vpop.f32.mrb[0].mxu0
        %v1828 = vadd.f32 %v1571, %v1827
        %1829 = vmatprep.mubr.f32.mxu0 0.0
        %1830 = vmatmul.mubr.f32.gmra.mrb[0].mxu0 %v857
        %v1831 = vpop.f32.mrb[0].mxu0
        %v1832 = vadd.f32 %v1575, %v1831
        %v1833 = vpop.f32.mrb[0].mxu0
        %v1834 = vadd.f32 %v1577, %v1833
        %1835 = vmatprep.mubr.f32.mxu0 0.0
        %1836 = vmatmul.mubr.f32.gmra.mrb[0].mxu0 %v860
        %v1837 = vpop.f32.mrb[0].mxu0
        %v1838 = vadd.f32 %v1581, %v1837
        %v1839 = vpop.f32.mrb[0].mxu0
        %v1840 = vadd.f32 %v1583, %v1839
        %1841 = vmatprep.mubr.f32.mxu0 0.0
        %1842 = vmatmul.mubr.f32.gmra.mrb[0].mxu0 %v863
        %v1843 = vpop.f32.mrb[0].mxu0
        %v1844 = vadd.f32 %v1587, %v1843
        %v1845 = vpop.f32.mrb[0].mxu0
        %v1846 = vadd.f32 %v1589, %v1845
        %1847 = vmatprep.mubr.f32.mxu0 0.0
        %1848 = vmatmul.mubr.f32.gmra.mrb[0].mxu0 %v866
        %v1849 = vpop.f32.mrb[0].mxu0
        %v1850 = vadd.f32 %v1593, %v1849
        %v1851 = vpop.f32.mrb[0].mxu0
        %v1852 = vadd.f32 %v1595, %v1851
        %1853 = vmatprep.mubr.f32.mxu0 0.0
        %1854 = vmatmul.mubr.f32.gmra.mrb[0].mxu0 %v869
        %v1855 = vpop.f32.mrb[0].mxu0
        %v1856 = vadd.f32 %v1599, %v1855
        %v1857 = vpop.f32.mrb[0].mxu0
        %v1858 = vadd.f32 %v1601, %v1857
        %1859 = vmatprep.mubr.f32.mxu0 0.0
        %1860 = vmatmul.mubr.f32.gmra.mrb[0].mxu0 %v872
        %v1861 = vpop.f32.mrb[0].mxu0
        %v1862 = vadd.f32 %v1605, %v1861
        %v1863 = vpop.f32.mrb[0].mxu0
        %v1864 = vadd.f32 %v1607, %v1863
        %1865 = vmatprep.mubr.f32.mxu0 0.0
        %1866 = vmatmul.mubr.f32.gmra.mrb[0].mxu0 %v875
        %v1867 = vpop.f32.mrb[0].mxu0
        %v1868 = vadd.f32 %v1611, %v1867
        %v1869 = vpop.f32.mrb[0].mxu0
        %v1870 = vadd.f32 %v1613, %v1869
        %1871 = vmatprep.mubr.f32.mxu0 0.0
        %1872 = vmatmul.mubr.f32.gmra.mrb[0].mxu0 %v878
        %v1873 = vpop.f32.mrb[0].mxu0
        %v1874 = vadd.f32 %v1617, %v1873
        %v1875 = vpop.f32.mrb[0].mxu0
        %v1876 = vadd.f32 %v1619, %v1875
        %1877 = vmatprep.mubr.f32.mxu0 0.0
        %1878 = vmatmul.mubr.f32.gmra.mrb[0].mxu0 %v881
        %v1879 = vpop.f32.mrb[0].mxu0
        %v1880 = vadd.f32 %v1623, %v1879
        %v1881 = vpop.f32.mrb[0].mxu0
        %v1882 = vadd.f32 %v1625, %v1881
        %1883 = vmatprep.mubr.f32.mxu0 0.0
        %1884 = vmatmul.mubr.f32.gmra.mrb[0].mxu0 %v884
        %v1885 = vpop.f32.mrb[0].mxu0
        %v1886 = vadd.f32 %v1629, %v1885
        %v1887 = vpop.f32.mrb[0].mxu0
        %v1888 = vadd.f32 %v1631, %v1887
        %1889 = vmatprep.mubr.f32.mxu0 0.0
        %1890 = vmatmul.mubr.f32.gmra.mrb[0].mxu0 %v887
        %v1891 = vpop.f32.mrb[0].mxu0
        %v1892 = vadd.f32 %v1635, %v1891
        %v1893 = vpop.f32.mrb[0].mxu0
        %v1894 = vadd.f32 %v1637, %v1893
        %1895 = vmatprep.mubr.f32.mxu0 0.0
        %1896 = vmatmul.mubr.f32.gmra.mrb[0].mxu0 %v890
        %v1897 = vpop.f32.mrb[0].mxu0
        %v1898 = vadd.f32 %v1641, %v1897
        %v1899 = vpop.f32.mrb[0].mxu0
        %v1900 = vadd.f32 %v1643, %v1899
        %1901 = vmatprep.mubr.f32.mxu0 0.0
        %1902 = vmatmul.mubr.f32.gmra.mrb[0].mxu0 %v893
        %v1903 = vpop.f32.mrb[0].mxu0
        %v1904 = vadd.f32 %v1647, %v1903
        %v1905 = vpop.f32.mrb[0].mxu0
        %v1906 = vadd.f32 %v1649, %v1905
        %1907 = vmatprep.mubr.f32.mxu0 0.0
        %1908 = vmatmul.mubr.f32.gmra.mrb[0].mxu0 %v896
        %v1909 = vpop.f32.mrb[0].mxu0
        %v1910 = vadd.f32 %v1653, %v1909
        %v1911 = vpop.f32.mrb[0].mxu0
        %v1912 = vadd.f32 %v1655, %v1911
        %1913 = vmatprep.mubr.f32.mxu0 0.0
        %1914 = vmatmul.mubr.f32.gmra.mrb[0].mxu0 %v899
        %v1915 = vpop.f32.mrb[0].mxu0
        %v1916 = vadd.f32 %v1659, %v1915
        %v1917 = vpop.f32.mrb[0].mxu0
        %v1918 = vadd.f32 %v1661, %v1917
        %1919 = vmatprep.mubr.f32.mxu0 0.0
        %1920 = vmatmul.mubr.f32.gmra.mrb[0].mxu0 %v902
        %v1921 = vpop.f32.mrb[0].mxu0
        %v1922 = vadd.f32 %v1665, %v1921
        %v1923 = vpop.f32.mrb[0].mxu0
        %v1924 = vadd.f32 %v1667, %v1923
        %1925 = vmatprep.mubr.f32.mxu0 0.0
        %1926 = vmatmul.mubr.f32.gmra.mrb[0].mxu0 %v905
        %v1927 = vpop.f32.mrb[0].mxu0
        %v1928 = vadd.f32 %v1671, %v1927
        %v1929 = vpop.f32.mrb[0].mxu0
        %v1930 = vadd.f32 %v1673, %v1929
        %1931 = vmatprep.mubr.f32.mxu0 0.0
        %1932 = vmatmul.mubr.f32.gmra.mrb[0].mxu0 %v908
        %v1933 = vpop.f32.mrb[0].mxu0
        %v1934 = vadd.f32 %v1677, %v1933
        %v1935 = vpop.f32.mrb[0].mxu0
        %v1936 = vadd.f32 %v1679, %v1935
        %1937 = vdwg.mxu0
        %v1938 = vmax.f32 %v1748, 0.0
        %v1939 = vmax.f32 %v1750, 0.0
        %v1940 = vmax.f32 %v1754, 0.0
        %v1941 = vmax.f32 %v1756, 0.0
        %v1942 = vmax.f32 %v1760, 0.0
        %v1943 = vmax.f32 %v1762, 0.0
        %v1944 = vmax.f32 %v1766, 0.0
        %v1945 = vmax.f32 %v1768, 0.0
        %v1946 = vmax.f32 %v1772, 0.0
        %v1947 = vmax.f32 %v1774, 0.0
        %v1948 = vmax.f32 %v1778, 0.0
        %v1949 = vmax.f32 %v1780, 0.0
        %v1950 = vmax.f32 %v1784, 0.0
        %v1951 = vmax.f32 %v1786, 0.0
        %v1952 = vmax.f32 %v1790, 0.0
        %v1953 = vmax.f32 %v1792, 0.0
        %v1954 = vmax.f32 %v1796, 0.0
        %v1955 = vmax.f32 %v1798, 0.0
        %v1956 = vmax.f32 %v1802, 0.0
        %v1957 = vmax.f32 %v1804, 0.0
        %v1958 = vmax.f32 %v1808, 0.0
        %v1959 = vmax.f32 %v1810, 0.0
        %v1960 = vmax.f32 %v1814, 0.0
        %v1961 = vmax.f32 %v1816, 0.0
        %v1962 = vmax.f32 %v1820, 0.0
        %v1963 = vmax.f32 %v1822, 0.0
        %v1964 = vmax.f32 %v1826, 0.0
        %v1965 = vmax.f32 %v1828, 0.0
        %v1966 = vmax.f32 %v1832, 0.0
        %v1967 = vmax.f32 %v1834, 0.0
        %v1968 = vmax.f32 %v1838, 0.0
        %v1969 = vmax.f32 %v1840, 0.0
        %v1970 = vmax.f32 %v1844, 0.0
        %v1971 = vmax.f32 %v1846, 0.0
        %v1972 = vmax.f32 %v1850, 0.0
        %v1973 = vmax.f32 %v1852, 0.0
        %v1974 = vmax.f32 %v1856, 0.0
        %v1975 = vmax.f32 %v1858, 0.0
        %v1976 = vmax.f32 %v1862, 0.0
        %v1977 = vmax.f32 %v1864, 0.0
        %v1978 = vmax.f32 %v1868, 0.0
        %v1979 = vmax.f32 %v1870, 0.0
        %v1980 = vmax.f32 %v1874, 0.0
        %v1981 = vmax.f32 %v1876, 0.0
        %v1982 = vmax.f32 %v1880, 0.0
        %v1983 = vmax.f32 %v1882, 0.0
        %v1984 = vmax.f32 %v1886, 0.0
        %v1985 = vmax.f32 %v1888, 0.0
        %v1986 = vmax.f32 %v1892, 0.0
        %v1987 = vmax.f32 %v1894, 0.0
        %v1988 = vmax.f32 %v1898, 0.0
        %v1989 = vmax.f32 %v1900, 0.0
        %v1990 = vmax.f32 %v1904, 0.0
        %v1991 = vmax.f32 %v1906, 0.0
        %v1992 = vmax.f32 %v1910, 0.0
        %v1993 = vmax.f32 %v1912, 0.0
        %v1994 = vmax.f32 %v1916, 0.0
        %v1995 = vmax.f32 %v1918, 0.0
        %v1996 = vmax.f32 %v1922, 0.0
        %v1997 = vmax.f32 %v1924, 0.0
        %v1998 = vmax.f32 %v1928, 0.0
        %v1999 = vmax.f32 %v1930, 0.0
        %v2000 = vmax.f32 %v1934, 0.0
        %v2001 = vmax.f32 %v1936, 0.0
        %v2002 = vld [vmem:[#allocation8] sm:$0xff]
        %v2003 = vld [vmem:[#allocation8 + $0x8] sm:$0xff]
        %v2004 = vld [vmem:[#allocation8 + $0x10] sm:$0xff]
        %v2005 = vld [vmem:[#allocation8 + $0x18] sm:$0xff]
        %v2006 = vld [vmem:[#allocation8 + $0x20] sm:$0xff]
        %v2007 = vld [vmem:[#allocation8 + $0x28] sm:$0xff]
        %v2008 = vld [vmem:[#allocation8 + $0x30] sm:$0xff]
        %v2009 = vld [vmem:[#allocation8 + $0x38] sm:$0xff]
        %v2010 = vld [vmem:[#allocation8 + $0x40] sm:$0xff]
        %v2011 = vld [vmem:[#allocation8 + $0x48] sm:$0xff]
        %v2012 = vld [vmem:[#allocation8 + $0x50] sm:$0xff]
        %v2013 = vld [vmem:[#allocation8 + $0x58] sm:$0xff]
        %v2014 = vld [vmem:[#allocation8 + $0x60] sm:$0xff]
        %v2015 = vld [vmem:[#allocation8 + $0x68] sm:$0xff]
        %v2016 = vld [vmem:[#allocation8 + $0x70] sm:$0xff]
        %v2017 = vld [vmem:[#allocation8 + $0x78] sm:$0xff]
        %v2018 = vld [vmem:[#allocation8 + $0x80] sm:$0xff]
        %v2019 = vld [vmem:[#allocation8 + $0x88] sm:$0xff]
        %v2020 = vld [vmem:[#allocation8 + $0x90] sm:$0xff]
        %v2021 = vld [vmem:[#allocation8 + $0x98] sm:$0xff]
        %v2022 = vld [vmem:[#allocation8 + $0xa0] sm:$0xff]
        %v2023 = vld [vmem:[#allocation8 + $0xa8] sm:$0xff]
        %v2024 = vld [vmem:[#allocation8 + $0xb0] sm:$0xff]
        %v2025 = vld [vmem:[#allocation8 + $0xb8] sm:$0xff]
        %v2026 = vld [vmem:[#allocation8 + $0xc0] sm:$0xff]
        %v2027 = vld [vmem:[#allocation8 + $0xc8] sm:$0xff]
        %v2028 = vld [vmem:[#allocation8 + $0xd0] sm:$0xff]
        %v2029 = vld [vmem:[#allocation8 + $0xd8] sm:$0xff]
        %v2030 = vld [vmem:[#allocation8 + $0xe0] sm:$0xff]
        %v2031 = vld [vmem:[#allocation8 + $0xe8] sm:$0xff]
        %v2032 = vld [vmem:[#allocation8 + $0xf0] sm:$0xff]
        %v2033 = vld [vmem:[#allocation8 + $0xf8] sm:$0xff]
        %v2034 = vld [vmem:[#allocation10] sm:$0x1]
        %v2036 = vlaneseq
        %v2037 = vshrl.u32 %v2036, 7
        %v2038 = vsub.s32 0, %v2037
        %v2039 = vrot.slane %v2034, %v2038
        %2041 = vmatprep.subr.mxu0 0.0
        %2042 = vmatpush1.msra.mxu0 %v2002
        %2043 = vmatprep.subr.mxu0 0.0
        %2044 = vmatpush1.msra.mxu0 %v2003
        %2045 = vmatprep.subr.mxu0 0.0
        %2046 = vmatpush1.msra.mxu0 %v2004
        %2047 = vmatprep.subr.mxu0 0.0
        %2048 = vmatpush1.msra.mxu0 %v2005
        %2049 = vmatprep.subr.mxu0 0.0
        %2050 = vmatpush1.msra.mxu0 %v2006
        %2051 = vmatprep.subr.mxu0 0.0
        %2052 = vmatpush1.msra.mxu0 %v2007
        %2053 = vmatprep.subr.mxu0 0.0
        %2054 = vmatpush1.msra.mxu0 %v2008
        %2055 = vmatprep.subr.mxu0 0.0
        %2056 = vmatpush1.msra.mxu0 %v2009
        %2057 = vmatprep.subr.mxu0 0.0
        %2058 = vmatpush1.msra.mxu0 %v2010
        %2059 = vmatprep.subr.mxu0 0.0
        %2060 = vmatpush1.msra.mxu0 %v2011
        %2061 = vmatprep.subr.mxu0 0.0
        %2062 = vmatpush1.msra.mxu0 %v2012
        %2063 = vmatprep.subr.mxu0 0.0
        %2064 = vmatpush1.msra.mxu0 %v2013
        %2065 = vmatprep.subr.mxu0 0.0
        %2066 = vmatpush1.msra.mxu0 %v2014
        %2067 = vmatprep.subr.mxu0 0.0
        %2068 = vmatpush1.msra.mxu0 %v2015
        %2069 = vmatprep.subr.mxu0 0.0
        %2070 = vmatpush1.msra.mxu0 %v2016
        %2071 = vmatprep.subr.mxu0 0.0
        %2072 = vmatpush1.msra.mxu0 %v2017
        %2073 = vmatprep.subr.mxu0 0.0
        %2074 = vmatpush1.msra.mxu0 %v2018
        %2075 = vmatprep.subr.mxu0 0.0
        %2076 = vmatpush1.msra.mxu0 %v2019
        %2077 = vmatprep.subr.mxu0 0.0
        %2078 = vmatpush1.msra.mxu0 %v2020
        %2079 = vmatprep.subr.mxu0 0.0
        %2080 = vmatpush1.msra.mxu0 %v2021
        %2081 = vmatprep.subr.mxu0 0.0
        %2082 = vmatpush1.msra.mxu0 %v2022
        %2083 = vmatprep.subr.mxu0 0.0
        %2084 = vmatpush1.msra.mxu0 %v2023
        %2085 = vmatprep.subr.mxu0 0.0
        %2086 = vmatpush1.msra.mxu0 %v2024
        %2087 = vmatprep.subr.mxu0 0.0
        %2088 = vmatpush1.msra.mxu0 %v2025
        %2089 = vmatprep.subr.mxu0 0.0
        %2090 = vmatpush1.msra.mxu0 %v2026
        %2091 = vmatprep.subr.mxu0 0.0
        %2092 = vmatpush1.msra.mxu0 %v2027
        %2093 = vmatprep.subr.mxu0 0.0
        %2094 = vmatpush1.msra.mxu0 %v2028
        %2095 = vmatprep.subr.mxu0 0.0
        %2096 = vmatpush1.msra.mxu0 %v2029
        %2097 = vmatprep.subr.mxu0 0.0
        %2098 = vmatpush1.msra.mxu0 %v2030
        %2099 = vmatprep.subr.mxu0 0.0
        %2100 = vmatpush1.msra.mxu0 %v2031
        %2101 = vmatprep.subr.mxu0 0.0
        %2102 = vmatpush1.msra.mxu0 %v2032
        %2103 = vmatprep.subr.mxu0 0.0
        %2104 = vmatpush1.msra.mxu0 %v2033
        %2105 = vmatprep.mubr.f32.mxu0 %v1939
        %2106 = vmatmul.mubr.f32.gmra.mrb[0].mxu0 %v1938
        %v2107 = vpop.f32.mrb[0].mxu0
        %v2108 = vadd.f32 %v2039, %v2107
        %v2109 = vpop.f32.mrb[0].mxu0
        %2110 = vmatprep.mubr.f32.mxu0 %v1941
        %2111 = vmatmul.mubr.f32.gmra.mrb[0].mxu0 %v1940
        %v2112 = vpop.f32.mrb[0].mxu0
        %v2113 = vadd.f32 %v2039, %v2112
        %v2114 = vpop.f32.mrb[0].mxu0
        %2115 = vmatprep.mubr.f32.mxu0 %v1943
        %2116 = vmatmul.mubr.f32.gmra.mrb[0].mxu0 %v1942
        %v2117 = vpop.f32.mrb[0].mxu0
        %v2118 = vadd.f32 %v2039, %v2117
        %v2119 = vpop.f32.mrb[0].mxu0
        %2120 = vmatprep.mubr.f32.mxu0 %v1945
        %2121 = vmatmul.mubr.f32.gmra.mrb[0].mxu0 %v1944
        %v2122 = vpop.f32.mrb[0].mxu0
        %v2123 = vadd.f32 %v2039, %v2122
        %v2124 = vpop.f32.mrb[0].mxu0
        %2125 = vmatprep.mubr.f32.mxu0 %v1947
        %2126 = vmatmul.mubr.f32.gmra.mrb[0].mxu0 %v1946
        %v2127 = vpop.f32.mrb[0].mxu0
        %v2128 = vadd.f32 %v2039, %v2127
        %v2129 = vpop.f32.mrb[0].mxu0
        %2130 = vmatprep.mubr.f32.mxu0 %v1949
        %2131 = vmatmul.mubr.f32.gmra.mrb[0].mxu0 %v1948
        %v2132 = vpop.f32.mrb[0].mxu0
        %v2133 = vadd.f32 %v2039, %v2132
        %v2134 = vpop.f32.mrb[0].mxu0
        %2135 = vmatprep.mubr.f32.mxu0 %v1951
        %2136 = vmatmul.mubr.f32.gmra.mrb[0].mxu0 %v1950
        %v2137 = vpop.f32.mrb[0].mxu0
        %v2138 = vadd.f32 %v2039, %v2137
        %v2139 = vpop.f32.mrb[0].mxu0
        %2140 = vmatprep.mubr.f32.mxu0 %v1953
        %2141 = vmatmul.mubr.f32.gmra.mrb[0].mxu0 %v1952
        %v2142 = vpop.f32.mrb[0].mxu0
        %v2143 = vadd.f32 %v2039, %v2142
        %v2144 = vpop.f32.mrb[0].mxu0
        %2145 = vmatprep.mubr.f32.mxu0 %v1955
        %2146 = vmatmul.mubr.f32.gmra.mrb[0].mxu0 %v1954
        %v2147 = vpop.f32.mrb[0].mxu0
        %v2148 = vadd.f32 %v2039, %v2147
        %v2149 = vpop.f32.mrb[0].mxu0
        %2150 = vmatprep.mubr.f32.mxu0 %v1957
        %2151 = vmatmul.mubr.f32.gmra.mrb[0].mxu0 %v1956
        %v2152 = vpop.f32.mrb[0].mxu0
        %v2153 = vadd.f32 %v2039, %v2152
        %v2154 = vpop.f32.mrb[0].mxu0
        %2155 = vmatprep.mubr.f32.mxu0 %v1959
        %2156 = vmatmul.mubr.f32.gmra.mrb[0].mxu0 %v1958
        %v2157 = vpop.f32.mrb[0].mxu0
        %v2158 = vadd.f32 %v2039, %v2157
        %v2159 = vpop.f32.mrb[0].mxu0
        %2160 = vmatprep.mubr.f32.mxu0 %v1961
        %2161 = vmatmul.mubr.f32.gmra.mrb[0].mxu0 %v1960
        %v2162 = vpop.f32.mrb[0].mxu0
        %v2163 = vadd.f32 %v2039, %v2162
        %v2164 = vpop.f32.mrb[0].mxu0
        %2165 = vmatprep.mubr.f32.mxu0 %v1963
        %2166 = vmatmul.mubr.f32.gmra.mrb[0].mxu0 %v1962
        %v2167 = vpop.f32.mrb[0].mxu0
        %v2168 = vadd.f32 %v2039, %v2167
        %v2169 = vpop.f32.mrb[0].mxu0
        %2170 = vmatprep.mubr.f32.mxu0 %v1965
        %2171 = vmatmul.mubr.f32.gmra.mrb[0].mxu0 %v1964
        %v2172 = vpop.f32.mrb[0].mxu0
        %v2173 = vadd.f32 %v2039, %v2172
        %v2174 = vpop.f32.mrb[0].mxu0
        %2175 = vmatprep.mubr.f32.mxu0 %v1967
        %2176 = vmatmul.mubr.f32.gmra.mrb[0].mxu0 %v1966
        %v2177 = vpop.f32.mrb[0].mxu0
        %v2178 = vadd.f32 %v2039, %v2177
        %v2179 = vpop.f32.mrb[0].mxu0
        %2180 = vmatprep.mubr.f32.mxu0 %v1969
        %2181 = vmatmul.mubr.f32.gmra.mrb[0].mxu0 %v1968
        %v2182 = vpop.f32.mrb[0].mxu0
        %v2183 = vadd.f32 %v2039, %v2182
        %v2184 = vpop.f32.mrb[0].mxu0
        %2185 = vmatprep.mubr.f32.mxu0 %v1971
        %2186 = vmatmul.mubr.f32.gmra.mrb[0].mxu0 %v1970
        %v2187 = vpop.f32.mrb[0].mxu0
        %v2188 = vadd.f32 %v2039, %v2187
        %v2189 = vpop.f32.mrb[0].mxu0
        %2190 = vmatprep.mubr.f32.mxu0 %v1973
        %2191 = vmatmul.mubr.f32.gmra.mrb[0].mxu0 %v1972
        %v2192 = vpop.f32.mrb[0].mxu0
        %v2193 = vadd.f32 %v2039, %v2192
        %v2194 = vpop.f32.mrb[0].mxu0
        %2195 = vmatprep.mubr.f32.mxu0 %v1975
        %2196 = vmatmul.mubr.f32.gmra.mrb[0].mxu0 %v1974
        %v2197 = vpop.f32.mrb[0].mxu0
        %v2198 = vadd.f32 %v2039, %v2197
        %v2199 = vpop.f32.mrb[0].mxu0
        %2200 = vmatprep.mubr.f32.mxu0 %v1977
        %2201 = vmatmul.mubr.f32.gmra.mrb[0].mxu0 %v1976
        %v2202 = vpop.f32.mrb[0].mxu0
        %v2203 = vadd.f32 %v2039, %v2202
        %v2204 = vpop.f32.mrb[0].mxu0
        %2205 = vmatprep.mubr.f32.mxu0 %v1979
        %2206 = vmatmul.mubr.f32.gmra.mrb[0].mxu0 %v1978
        %v2207 = vpop.f32.mrb[0].mxu0
        %v2208 = vadd.f32 %v2039, %v2207
        %v2209 = vpop.f32.mrb[0].mxu0
        %2210 = vmatprep.mubr.f32.mxu0 %v1981
        %2211 = vmatmul.mubr.f32.gmra.mrb[0].mxu0 %v1980
        %v2212 = vpop.f32.mrb[0].mxu0
        %v2213 = vadd.f32 %v2039, %v2212
        %v2214 = vpop.f32.mrb[0].mxu0
        %2215 = vmatprep.mubr.f32.mxu0 %v1983
        %2216 = vmatmul.mubr.f32.gmra.mrb[0].mxu0 %v1982
        %v2217 = vpop.f32.mrb[0].mxu0
        %v2218 = vadd.f32 %v2039, %v2217
        %v2219 = vpop.f32.mrb[0].mxu0
        %2220 = vmatprep.mubr.f32.mxu0 %v1985
        %2221 = vmatmul.mubr.f32.gmra.mrb[0].mxu0 %v1984
        %v2222 = vpop.f32.mrb[0].mxu0
        %v2223 = vadd.f32 %v2039, %v2222
        %v2224 = vpop.f32.mrb[0].mxu0
        %2225 = vmatprep.mubr.f32.mxu0 %v1987
        %2226 = vmatmul.mubr.f32.gmra.mrb[0].mxu0 %v1986
        %v2227 = vpop.f32.mrb[0].mxu0
        %v2228 = vadd.f32 %v2039, %v2227
        %v2229 = vpop.f32.mrb[0].mxu0
        %2230 = vmatprep.mubr.f32.mxu0 %v1989
        %2231 = vmatmul.mubr.f32.gmra.mrb[0].mxu0 %v1988
        %v2232 = vpop.f32.mrb[0].mxu0
        %v2233 = vadd.f32 %v2039, %v2232
        %v2234 = vpop.f32.mrb[0].mxu0
        %2235 = vmatprep.mubr.f32.mxu0 %v1991
        %2236 = vmatmul.mubr.f32.gmra.mrb[0].mxu0 %v1990
        %v2237 = vpop.f32.mrb[0].mxu0
        %v2238 = vadd.f32 %v2039, %v2237
        %v2239 = vpop.f32.mrb[0].mxu0
        %2240 = vmatprep.mubr.f32.mxu0 %v1993
        %2241 = vmatmul.mubr.f32.gmra.mrb[0].mxu0 %v1992
        %v2242 = vpop.f32.mrb[0].mxu0
        %v2243 = vadd.f32 %v2039, %v2242
        %v2244 = vpop.f32.mrb[0].mxu0
        %2245 = vmatprep.mubr.f32.mxu0 %v1995
        %2246 = vmatmul.mubr.f32.gmra.mrb[0].mxu0 %v1994
        %v2247 = vpop.f32.mrb[0].mxu0
        %v2248 = vadd.f32 %v2039, %v2247
        %v2249 = vpop.f32.mrb[0].mxu0
        %2250 = vmatprep.mubr.f32.mxu0 %v1997
        %2251 = vmatmul.mubr.f32.gmra.mrb[0].mxu0 %v1996
        %v2252 = vpop.f32.mrb[0].mxu0
        %v2253 = vadd.f32 %v2039, %v2252
        %v2254 = vpop.f32.mrb[0].mxu0
        %2255 = vmatprep.mubr.f32.mxu0 %v1999
        %2256 = vmatmul.mubr.f32.gmra.mrb[0].mxu0 %v1998
        %v2257 = vpop.f32.mrb[0].mxu0
        %v2258 = vadd.f32 %v2039, %v2257
        %v2259 = vpop.f32.mrb[0].mxu0
        %2260 = vmatprep.mubr.f32.mxu0 %v2001
        %2261 = vmatmul.mubr.f32.gmra.mrb[0].mxu0 %v2000
        %v2262 = vpop.f32.mrb[0].mxu0
        %v2263 = vadd.f32 %v2039, %v2262
        %v2264 = vpop.f32.mrb[0].mxu0
        %2265 = vdwg.mxu0
        %v2266 = vmax.f32 %v2108, 0.0
        %v2267 = vmax.f32 %v2113, 0.0
        %v2268 = vmax.f32 %v2118, 0.0
        %v2269 = vmax.f32 %v2123, 0.0
        %v2270 = vmax.f32 %v2128, 0.0
        %v2271 = vmax.f32 %v2133, 0.0
        %v2272 = vmax.f32 %v2138, 0.0
        %v2273 = vmax.f32 %v2143, 0.0
        %v2274 = vmax.f32 %v2148, 0.0
        %v2275 = vmax.f32 %v2153, 0.0
        %v2276 = vmax.f32 %v2158, 0.0
        %v2277 = vmax.f32 %v2163, 0.0
        %v2278 = vmax.f32 %v2168, 0.0
        %v2279 = vmax.f32 %v2173, 0.0
        %v2280 = vmax.f32 %v2178, 0.0
        %v2281 = vmax.f32 %v2183, 0.0
        %v2282 = vmax.f32 %v2188, 0.0
        %v2283 = vmax.f32 %v2193, 0.0
        %v2284 = vmax.f32 %v2198, 0.0
        %v2285 = vmax.f32 %v2203, 0.0
        %v2286 = vmax.f32 %v2208, 0.0
        %v2287 = vmax.f32 %v2213, 0.0
        %v2288 = vmax.f32 %v2218, 0.0
        %v2289 = vmax.f32 %v2223, 0.0
        %v2290 = vmax.f32 %v2228, 0.0
        %v2291 = vmax.f32 %v2233, 0.0
        %v2292 = vmax.f32 %v2238, 0.0
        %v2293 = vmax.f32 %v2243, 0.0
        %v2294 = vmax.f32 %v2248, 0.0
        %v2295 = vmax.f32 %v2253, 0.0
        %v2296 = vmax.f32 %v2258, 0.0
        %v2297 = vmax.f32 %v2263, 0.0
        %v2298 = vld [vmem:[#allocation11] sm:$0xff]
        %v2299 = vld [vmem:[#allocation11 + $0x8] sm:$0xff]
        %v2300 = vld [vmem:[#allocation11 + $0x10] sm:$0xff]
        %v2301 = vld [vmem:[#allocation11 + $0x18] sm:$0xff]
        %v2302 = vld [vmem:[#allocation11 + $0x20] sm:$0xff]
        %v2303 = vld [vmem:[#allocation11 + $0x28] sm:$0xff]
        %v2304 = vld [vmem:[#allocation11 + $0x30] sm:$0xff]
        %v2305 = vld [vmem:[#allocation11 + $0x38] sm:$0xff]
        %v2306 = vld [vmem:[#allocation11 + $0x40] sm:$0xff]
        %v2307 = vld [vmem:[#allocation11 + $0x48] sm:$0xff]
        %v2308 = vld [vmem:[#allocation11 + $0x50] sm:$0xff]
        %v2309 = vld [vmem:[#allocation11 + $0x58] sm:$0xff]
        %v2310 = vld [vmem:[#allocation11 + $0x60] sm:$0xff]
        %v2311 = vld [vmem:[#allocation11 + $0x68] sm:$0xff]
        %v2312 = vld [vmem:[#allocation11 + $0x70] sm:$0xff]
        %v2313 = vld [vmem:[#allocation11 + $0x78] sm:$0xff]
        %v2314 = vld [vmem:[#allocation13] sm:$0x1]
        %v2316 = vlaneseq
        %v2317 = vshrl.u32 %v2316, 7
        %v2318 = vsub.s32 0, %v2317
        %v2319 = vrot.slane %v2314, %v2318
        %2321 = vmatprep.subr.mxu0 0.0
        %2322 = vmatpush1.msra.mxu0 %v2298
        %2323 = vmatprep.subr.mxu0 0.0
        %2324 = vmatpush1.msra.mxu0 %v2299
        %2325 = vmatprep.subr.mxu0 0.0
        %2326 = vmatpush1.msra.mxu0 %v2300
        %2327 = vmatprep.subr.mxu0 0.0
        %2328 = vmatpush1.msra.mxu0 %v2301
        %2329 = vmatprep.subr.mxu0 0.0
        %2330 = vmatpush1.msra.mxu0 %v2302
        %2331 = vmatprep.subr.mxu0 0.0
        %2332 = vmatpush1.msra.mxu0 %v2303
        %2333 = vmatprep.subr.mxu0 0.0
        %2334 = vmatpush1.msra.mxu0 %v2304
        %2335 = vmatprep.subr.mxu0 0.0
        %2336 = vmatpush1.msra.mxu0 %v2305
        %2337 = vmatprep.subr.mxu0 0.0
        %2338 = vmatpush1.msra.mxu0 %v2306
        %2339 = vmatprep.subr.mxu0 0.0
        %2340 = vmatpush1.msra.mxu0 %v2307
        %2341 = vmatprep.subr.mxu0 0.0
        %2342 = vmatpush1.msra.mxu0 %v2308
        %2343 = vmatprep.subr.mxu0 0.0
        %2344 = vmatpush1.msra.mxu0 %v2309
        %2345 = vmatprep.subr.mxu0 0.0
        %2346 = vmatpush1.msra.mxu0 %v2310
        %2347 = vmatprep.subr.mxu0 0.0
        %2348 = vmatpush1.msra.mxu0 %v2311
        %2349 = vmatprep.subr.mxu0 0.0
        %2350 = vmatpush1.msra.mxu0 %v2312
        %2351 = vmatprep.subr.mxu0 0.0
        %2352 = vmatpush1.msra.mxu0 %v2313
        %2353 = vmatprep.subr.mxu0 0.0
        %2354 = vmatpush1.msra.mxu0 0.0
        %2355 = vmatprep.subr.mxu0 0.0
        %2356 = vmatpush1.msra.mxu0 0.0
        %2357 = vmatprep.subr.mxu0 0.0
        %2358 = vmatpush1.msra.mxu0 0.0
        %2359 = vmatprep.subr.mxu0 0.0
        %2360 = vmatpush1.msra.mxu0 0.0
        %2361 = vmatprep.subr.mxu0 0.0
        %2362 = vmatpush1.msra.mxu0 0.0
        %2363 = vmatprep.subr.mxu0 0.0
        %2364 = vmatpush1.msra.mxu0 0.0
        %2365 = vmatprep.subr.mxu0 0.0
        %2366 = vmatpush1.msra.mxu0 0.0
        %2367 = vmatprep.subr.mxu0 0.0
        %2368 = vmatpush1.msra.mxu0 0.0
        %2369 = vmatprep.subr.mxu0 0.0
        %2370 = vmatpush1.msra.mxu0 0.0
        %2371 = vmatprep.subr.mxu0 0.0
        %2372 = vmatpush1.msra.mxu0 0.0
        %2373 = vmatprep.subr.mxu0 0.0
        %2374 = vmatpush1.msra.mxu0 0.0
        %2375 = vmatprep.subr.mxu0 0.0
        %2376 = vmatpush1.msra.mxu0 0.0
        %2377 = vmatprep.subr.mxu0 0.0
        %2378 = vmatpush1.msra.mxu0 0.0
        %2379 = vmatprep.subr.mxu0 0.0
        %2380 = vmatpush1.msra.mxu0 0.0
        %2381 = vmatprep.subr.mxu0 0.0
        %2382 = vmatpush1.msra.mxu0 0.0
        %2383 = vmatprep.subr.mxu0 0.0
        %2384 = vmatpush1.msra.mxu0 0.0
        %2385 = vmatprep.mubr.f32.mxu0 0.0
        %2386 = vmatmul.mubr.f32.gmra.mrb[0].mxu0 %v2266
        %v2387 = vpop.f32.mrb[0].mxu0
        %v2388 = vadd.f32 %v2319, %v2387
        %v2389 = vpop.f32.mrb[0].mxu0
        %2390 = vmatprep.mubr.f32.mxu0 0.0
        %2391 = vmatmul.mubr.f32.gmra.mrb[0].mxu0 %v2267
        %v2392 = vpop.f32.mrb[0].mxu0
        %v2393 = vadd.f32 %v2319, %v2392
        %v2394 = vpop.f32.mrb[0].mxu0
        %2395 = vmatprep.mubr.f32.mxu0 0.0
        %2396 = vmatmul.mubr.f32.gmra.mrb[0].mxu0 %v2268
        %v2397 = vpop.f32.mrb[0].mxu0
        %v2398 = vadd.f32 %v2319, %v2397
        %v2399 = vpop.f32.mrb[0].mxu0
        %2400 = vmatprep.mubr.f32.mxu0 0.0
        %2401 = vmatmul.mubr.f32.gmra.mrb[0].mxu0 %v2269
        %v2402 = vpop.f32.mrb[0].mxu0
        %v2403 = vadd.f32 %v2319, %v2402
        %v2404 = vpop.f32.mrb[0].mxu0
        %2405 = vmatprep.mubr.f32.mxu0 0.0
        %2406 = vmatmul.mubr.f32.gmra.mrb[0].mxu0 %v2270
        %v2407 = vpop.f32.mrb[0].mxu0
        %v2408 = vadd.f32 %v2319, %v2407
        %v2409 = vpop.f32.mrb[0].mxu0
        %2410 = vmatprep.mubr.f32.mxu0 0.0
        %2411 = vmatmul.mubr.f32.gmra.mrb[0].mxu0 %v2271
        %v2412 = vpop.f32.mrb[0].mxu0
        %v2413 = vadd.f32 %v2319, %v2412
        %v2414 = vpop.f32.mrb[0].mxu0
        %2415 = vmatprep.mubr.f32.mxu0 0.0
        %2416 = vmatmul.mubr.f32.gmra.mrb[0].mxu0 %v2272
        %v2417 = vpop.f32.mrb[0].mxu0
        %v2418 = vadd.f32 %v2319, %v2417
        %v2419 = vpop.f32.mrb[0].mxu0
        %2420 = vmatprep.mubr.f32.mxu0 0.0
        %2421 = vmatmul.mubr.f32.gmra.mrb[0].mxu0 %v2273
        %v2422 = vpop.f32.mrb[0].mxu0
        %v2423 = vadd.f32 %v2319, %v2422
        %v2424 = vpop.f32.mrb[0].mxu0
        %2425 = vmatprep.mubr.f32.mxu0 0.0
        %2426 = vmatmul.mubr.f32.gmra.mrb[0].mxu0 %v2274
        %v2427 = vpop.f32.mrb[0].mxu0
        %v2428 = vadd.f32 %v2319, %v2427
        %v2429 = vpop.f32.mrb[0].mxu0
        %2430 = vmatprep.mubr.f32.mxu0 0.0
        %2431 = vmatmul.mubr.f32.gmra.mrb[0].mxu0 %v2275
        %v2432 = vpop.f32.mrb[0].mxu0
        %v2433 = vadd.f32 %v2319, %v2432
        %v2434 = vpop.f32.mrb[0].mxu0
        %2435 = vmatprep.mubr.f32.mxu0 0.0
        %2436 = vmatmul.mubr.f32.gmra.mrb[0].mxu0 %v2276
        %v2437 = vpop.f32.mrb[0].mxu0
        %v2438 = vadd.f32 %v2319, %v2437
        %v2439 = vpop.f32.mrb[0].mxu0
        %2440 = vmatprep.mubr.f32.mxu0 0.0
        %2441 = vmatmul.mubr.f32.gmra.mrb[0].mxu0 %v2277
        %v2442 = vpop.f32.mrb[0].mxu0
        %v2443 = vadd.f32 %v2319, %v2442
        %v2444 = vpop.f32.mrb[0].mxu0
        %2445 = vmatprep.mubr.f32.mxu0 0.0
        %2446 = vmatmul.mubr.f32.gmra.mrb[0].mxu0 %v2278
        %v2447 = vpop.f32.mrb[0].mxu0
        %v2448 = vadd.f32 %v2319, %v2447
        %v2449 = vpop.f32.mrb[0].mxu0
        %2450 = vmatprep.mubr.f32.mxu0 0.0
        %2451 = vmatmul.mubr.f32.gmra.mrb[0].mxu0 %v2279
        %v2452 = vpop.f32.mrb[0].mxu0
        %v2453 = vadd.f32 %v2319, %v2452
        %v2454 = vpop.f32.mrb[0].mxu0
        %2455 = vmatprep.mubr.f32.mxu0 0.0
        %2456 = vmatmul.mubr.f32.gmra.mrb[0].mxu0 %v2280
        %v2457 = vpop.f32.mrb[0].mxu0
        %v2458 = vadd.f32 %v2319, %v2457
        %v2459 = vpop.f32.mrb[0].mxu0
        %2460 = vmatprep.mubr.f32.mxu0 0.0
        %2461 = vmatmul.mubr.f32.gmra.mrb[0].mxu0 %v2281
        %v2462 = vpop.f32.mrb[0].mxu0
        %v2463 = vadd.f32 %v2319, %v2462
        %v2464 = vpop.f32.mrb[0].mxu0
        %2465 = vmatprep.mubr.f32.mxu0 0.0
        %2466 = vmatmul.mubr.f32.gmra.mrb[0].mxu0 %v2282
        %v2467 = vpop.f32.mrb[0].mxu0
        %v2468 = vadd.f32 %v2319, %v2467
        %v2469 = vpop.f32.mrb[0].mxu0
        %2470 = vmatprep.mubr.f32.mxu0 0.0
        %2471 = vmatmul.mubr.f32.gmra.mrb[0].mxu0 %v2283
        %v2472 = vpop.f32.mrb[0].mxu0
        %v2473 = vadd.f32 %v2319, %v2472
        %v2474 = vpop.f32.mrb[0].mxu0
        %2475 = vmatprep.mubr.f32.mxu0 0.0
        %2476 = vmatmul.mubr.f32.gmra.mrb[0].mxu0 %v2284
        %v2477 = vpop.f32.mrb[0].mxu0
        %v2478 = vadd.f32 %v2319, %v2477
        %v2479 = vpop.f32.mrb[0].mxu0
        %2480 = vmatprep.mubr.f32.mxu0 0.0
        %2481 = vmatmul.mubr.f32.gmra.mrb[0].mxu0 %v2285
        %v2482 = vpop.f32.mrb[0].mxu0
        %v2483 = vadd.f32 %v2319, %v2482
        %v2484 = vpop.f32.mrb[0].mxu0
        %2485 = vmatprep.mubr.f32.mxu0 0.0
        %2486 = vmatmul.mubr.f32.gmra.mrb[0].mxu0 %v2286
        %v2487 = vpop.f32.mrb[0].mxu0
        %v2488 = vadd.f32 %v2319, %v2487
        %v2489 = vpop.f32.mrb[0].mxu0
        %2490 = vmatprep.mubr.f32.mxu0 0.0
        %2491 = vmatmul.mubr.f32.gmra.mrb[0].mxu0 %v2287
        %v2492 = vpop.f32.mrb[0].mxu0
        %v2493 = vadd.f32 %v2319, %v2492
        %v2494 = vpop.f32.mrb[0].mxu0
        %2495 = vmatprep.mubr.f32.mxu0 0.0
        %2496 = vmatmul.mubr.f32.gmra.mrb[0].mxu0 %v2288
        %v2497 = vpop.f32.mrb[0].mxu0
        %v2498 = vadd.f32 %v2319, %v2497
        %v2499 = vpop.f32.mrb[0].mxu0
        %2500 = vmatprep.mubr.f32.mxu0 0.0
        %2501 = vmatmul.mubr.f32.gmra.mrb[0].mxu0 %v2289
        %v2502 = vpop.f32.mrb[0].mxu0
        %v2503 = vadd.f32 %v2319, %v2502
        %v2504 = vpop.f32.mrb[0].mxu0
        %2505 = vmatprep.mubr.f32.mxu0 0.0
        %2506 = vmatmul.mubr.f32.gmra.mrb[0].mxu0 %v2290
        %v2507 = vpop.f32.mrb[0].mxu0
        %v2508 = vadd.f32 %v2319, %v2507
        %v2509 = vpop.f32.mrb[0].mxu0
        %2510 = vmatprep.mubr.f32.mxu0 0.0
        %2511 = vmatmul.mubr.f32.gmra.mrb[0].mxu0 %v2291
        %v2512 = vpop.f32.mrb[0].mxu0
        %v2513 = vadd.f32 %v2319, %v2512
        %v2514 = vpop.f32.mrb[0].mxu0
        %2515 = vmatprep.mubr.f32.mxu0 0.0
        %2516 = vmatmul.mubr.f32.gmra.mrb[0].mxu0 %v2292
        %v2517 = vpop.f32.mrb[0].mxu0
        %v2518 = vadd.f32 %v2319, %v2517
        %v2519 = vpop.f32.mrb[0].mxu0
        %2520 = vmatprep.mubr.f32.mxu0 0.0
        %2521 = vmatmul.mubr.f32.gmra.mrb[0].mxu0 %v2293
        %v2522 = vpop.f32.mrb[0].mxu0
        %v2523 = vadd.f32 %v2319, %v2522
        %v2524 = vpop.f32.mrb[0].mxu0
        %2525 = vmatprep.mubr.f32.mxu0 0.0
        %2526 = vmatmul.mubr.f32.gmra.mrb[0].mxu0 %v2294
        %v2527 = vpop.f32.mrb[0].mxu0
        %v2528 = vadd.f32 %v2319, %v2527
        %v2529 = vpop.f32.mrb[0].mxu0
        %2530 = vmatprep.mubr.f32.mxu0 0.0
        %2531 = vmatmul.mubr.f32.gmra.mrb[0].mxu0 %v2295
        %v2532 = vpop.f32.mrb[0].mxu0
        %v2533 = vadd.f32 %v2319, %v2532
        %v2534 = vpop.f32.mrb[0].mxu0
        %2535 = vmatprep.mubr.f32.mxu0 0.0
        %2536 = vmatmul.mubr.f32.gmra.mrb[0].mxu0 %v2296
        %v2537 = vpop.f32.mrb[0].mxu0
        %v2538 = vadd.f32 %v2319, %v2537
        %v2539 = vpop.f32.mrb[0].mxu0
        %2540 = vmatprep.mubr.f32.mxu0 0.0
        %2541 = vmatmul.mubr.f32.gmra.mrb[0].mxu0 %v2297
        %v2542 = vpop.f32.mrb[0].mxu0
        %v2543 = vadd.f32 %v2319, %v2542
        %v2544 = vpop.f32.mrb[0].mxu0
        %2545 = vdwg.mxu0
        %2546 = vst [vmem:[%s378] sm:$0xff] %v2388
        %2547 = vst [vmem:[%s378 + $0x8] sm:$0xff] %v2393
        %2548 = vst [vmem:[%s378 + $0x10] sm:$0xff] %v2398
        %2549 = vst [vmem:[%s378 + $0x18] sm:$0xff] %v2403
        %2550 = vst [vmem:[%s378 + $0x20] sm:$0xff] %v2408
        %2551 = vst [vmem:[%s378 + $0x28] sm:$0xff] %v2413
        %2552 = vst [vmem:[%s378 + $0x30] sm:$0xff] %v2418
        %2553 = vst [vmem:[%s378 + $0x38] sm:$0xff] %v2423
        %2554 = vst [vmem:[%s378 + $0x40] sm:$0xff] %v2428
        %2555 = vst [vmem:[%s378 + $0x48] sm:$0xff] %v2433
        %2556 = vst [vmem:[%s378 + $0x50] sm:$0xff] %v2438
        %2557 = vst [vmem:[%s378 + $0x58] sm:$0xff] %v2443
        %2558 = vst [vmem:[%s378 + $0x60] sm:$0xff] %v2448
        %2559 = vst [vmem:[%s378 + $0x68] sm:$0xff] %v2453
        %2560 = vst [vmem:[%s378 + $0x70] sm:$0xff] %v2458
        %2561 = vst [vmem:[%s378 + $0x78] sm:$0xff] %v2463
        %2562 = vst [vmem:[%s378 + $0x80] sm:$0xff] %v2468
        %2563 = vst [vmem:[%s378 + $0x88] sm:$0xff] %v2473
        %2564 = vst [vmem:[%s378 + $0x90] sm:$0xff] %v2478
        %2565 = vst [vmem:[%s378 + $0x98] sm:$0xff] %v2483
        %2566 = vst [vmem:[%s378 + $0xa0] sm:$0xff] %v2488
        %2567 = vst [vmem:[%s378 + $0xa8] sm:$0xff] %v2493
        %2568 = vst [vmem:[%s378 + $0xb0] sm:$0xff] %v2498
        %2569 = vst [vmem:[%s378 + $0xb8] sm:$0xff] %v2503
        %2570 = vst [vmem:[%s378 + $0xc0] sm:$0xff] %v2508
        %2571 = vst [vmem:[%s378 + $0xc8] sm:$0xff] %v2513
        %2572 = vst [vmem:[%s378 + $0xd0] sm:$0xff] %v2518
        %2573 = vst [vmem:[%s378 + $0xd8] sm:$0xff] %v2523
        %2574 = vst [vmem:[%s378 + $0xe0] sm:$0xff] %v2528
        %2575 = vst [vmem:[%s378 + $0xe8] sm:$0xff] %v2533
        %2576 = vst [vmem:[%s378 + $0xf0] sm:$0xff] %v2538
        %2577 = vst [vmem:[%s378 + $0xf8] sm:$0xff] %v2543
        %s2578 = sand.u32 %s187, 1
        %s2579 = scalar_lea.sflag [#allocation4], %s2578
        %s2580 = sand.u32 %s187, 1
        %s2581 = smul.addr %s2580, 256
        %s2582 = scalar_lea.vmem [#allocation14], %s2581
        // Predicated region
        $region77: #{mlp_forward.1} parent=47 // pred_check
          %p2583 = pneg %p197
        $region78: #{mlp_forward.1} parent=47 // pred_check_branch
          %2585 = sbr.rel (%p2583) target = $region80
        $region79: #{mlp_forward.1} parent=47 // pred_region
          %s2586 = smul.u32 32, %s27
          %s2588 = ssub.s32 4096, 4096
          %2589 = vsyncadd %s2579, %s2588
          %s2590 = smul.addr %s2586, 128
          %s2591 = scalar_lea.hbm %s7, %s2590
          %s2592 = sshll.u32 %s2582, 4
          %s2593 = int_to_ptr.vmem [resolvable:$true] %s2592
          %2598 = dma.vmem_to_hbm [thread:$0]  %s2593, 4096, %s2591, %s2579, 128, 128, 8
        $region80: #{mlp_forward.1} parent=47 // pred_fallthru
          _
      $region48: #{mlp_forward.1} parent=5 // pred_fallthru
        _
      %p2599 = scmp.le.s32.totalorder 2, %s22
      // Predicated region
      $region81: #{mlp_forward.1} parent=5 // pred_check
        %p2600 = pneg %p2599
      $region82: #{mlp_forward.1} parent=5 // pred_check_branch
        %2602 = sbr.rel (%p2600) target = $region84
      $region83: #{mlp_forward.1} parent=5 // pred_region
        %s2603 = ssub.s32 %s22, 2
        // Predicated region
        $region85: #{mlp_forward.1} parent=83 // pred_check
          %p2604 = pneg %p203
        $region86: #{mlp_forward.1} parent=83 // pred_check_branch
          %2606 = sbr.rel (%p2604) target = $region88
        $region87: #{mlp_forward.1} parent=83 // pred_region
          %s2607 = sand.u32 %s188, 1
          %s2608 = scalar_lea.sflag [#allocation4], %s2607
          %s2609 = sand.u32 %s188, 1
          %s2610 = smul.addr %s2609, 256
          %s2611 = scalar_lea.vmem [#allocation14], %s2610
          %2612 = dma.done %s2608, 4096
        $region88: #{mlp_forward.1} parent=83 // pred_fallthru
          _
      $region84: #{mlp_forward.1} parent=5 // pred_fallthru
        _
    $region6: #{mlp_forward.1} parent=1 // loop_footer
      %s26 = sadd.s32 1, %s22
    $region7: #{mlp_forward.1} parent=1 // loop_footer_branch
      %21 = sbr.rel target = $region3
    $region8: #{mlp_forward.1} parent=1 // loop_exit
      _
    %2613 = vsyncpa [#allocation3], 1
    %s2614 = scalar_lea.sflag [#allocation3], 1
    %2615 = vsyncpa %s2614, 1
    %2616 = vsyncpa [#allocation6], 1
    %2617 = vsyncpa [#allocation9], 1
    %2618 = vsyncpa [#allocation12], 1
    %2619 = vsyncpa [#allocation4], 1
    %s2620 = scalar_lea.sflag [#allocation4], 1
    %2621 = vsyncpa %s2620, 1

</llo_original>
